<compile_context>
chip_gen: v7x
topology: tpu7x:2x2x1
jax: 0.10.0
libtpu: 0.0.40
codegen_flags: <defaults>
</compile_context>

<pallas_src>
import functools

import jax
import jax.numpy as jnp
import numpy as np
from jax import lax
from jax.experimental import pallas as pl
from jax.experimental.pallas import tpu as pltpu

_MIB = 1024 * 1024


def _pick_tile(total, cap, align):
    """Largest tile <= cap dividing `total` and a multiple of `align`
    (falls back to the full dimension, which is always a legal block size)."""
    if total <= cap:
        return total
    t = cap - (cap % align)
    while t >= align:
        if total % t == 0:
            return t
        t -= align
    return total


def _vmem_budget_bytes():
    """Generation-aware scoped-VMEM budget (75% of physical, 32..100 MiB)."""
    cap = 64 * _MIB
    try:
        info_fn = getattr(pltpu, "get_tpu_info", None)
        if info_fn is not None:
            cap = int(info_fn().vmem_capacity_bytes)
    except Exception:
        cap = 64 * _MIB
    return int(max(32 * _MIB, min((cap * 3) // 4, 100 * _MIB)))


def _fwd_vmem_bytes(n_tile, t_tile, K, D):
    """Double-buffered block footprint + in-kernel temporaries (bytes), with
    sublane padding of the small second-minor dims accounted for."""
    kpad = -(-K // 8) * 8
    dpad = -(-D // 8) * 8
    blk_lam = 4 * n_tile * kpad * t_tile      # lambda block (padded K sublanes)
    blk_theta = blk_lam
    blk_phip = 4 * K * dpad * t_tile          # phi_prob block
    blk_pi = 4 * n_tile * dpad * t_tile       # pi block
    pipeline = 2 * (blk_lam + blk_phip + blk_theta + blk_pi)   # double buffering
    temps = 3 * blk_lam + blk_pi              # lam/e/theta values + acc
    return pipeline + temps


def _fit_tiles(N, T, K, D, budget):
    """D-aware tile selection: shrink n_tile first, then t_tile, to fit VMEM."""
    t_cap, n_cap = 512, 256
    t_tile = _pick_tile(T, t_cap, 128)
    n_tile = _pick_tile(N, n_cap, 8)
    while _fwd_vmem_bytes(n_tile, t_tile, K, D) > budget and n_cap > 8:
        n_cap //= 2
        n_tile = _pick_tile(N, n_cap, 8)
    while _fwd_vmem_bytes(n_tile, t_tile, K, D) > budget and t_cap > 128:
        t_cap //= 2
        t_tile = _pick_tile(T, t_cap, 128)
    # Guarantee >= 2 parallel tiles for the v7x megacore when cheaply possible.
    if T // t_tile == 1 and N // n_tile == 1 and T >= 256:
        cap2 = max(128, ((T // 2) // 128) * 128)
        t2 = _pick_tile(T, cap2, 128)
        if T % t2 == 0 and T // t2 >= 2:
            t_tile = t2
    return n_tile, t_tile


# ----------------------------------------------------------------------------
# Kernel 0: phi_prob = sigmoid(phi), computed ONCE (was redone per N tile).
# ----------------------------------------------------------------------------
def _sigmoid_kernel(phi_ref, phiprob_ref):
    phiprob_ref[...] = pl.reciprocal(1.0 + jnp.exp(-phi_ref[...]), approx=False)


# ----------------------------------------------------------------------------
# Kernel 1: fused softmax(K) + einsum('nkt,kdt->ndt'), native (N, K, T) layout.
# lambda/theta blocks: (Nt, K, Tt); phi_prob block: (K, D, Tt); pi: (Nt, D, Tt).
# T is the lane axis everywhere; softmax reduces over the tiny K sublane axis.
# ----------------------------------------------------------------------------
def _forward_kernel(lam_ref, phiprob_ref, pi_ref, theta_ref):
    lam = lam_ref[...]                                        # (Nt, K, Tt)
    m = jnp.max(lam, axis=1, keepdims=True)                   # (Nt, 1, Tt)
    e = jnp.exp(lam - m)
    s = jnp.sum(e, axis=1, keepdims=True)
    inv_s = pl.reciprocal(s, approx=False)                    # EUP, not VALU divide
    theta = e * inv_s                                         # (Nt, K, Tt)
    theta_ref[...] = theta

    phi_prob = phiprob_ref[...]                               # (K, D, Tt)
    K = lam.shape[1]
    # pi[n,d,t] = sum_k theta[n,k,t] * phi_prob[k,d,t]; K tiny -> unrolled MAC,
    # accumulator seeded from k=0 (no zero-fill pass over the largest buffer).
    acc = theta[:, 0:1, :] * phi_prob[0][None, :, :]          # (Nt, D, Tt)
    for k in range(1, K):
        acc = acc + theta[:, k:k + 1, :] * phi_prob[k][None, :, :]
    pi_ref[...] = acc


# ----------------------------------------------------------------------------
# Kernel 2: GP covariance update (update_kernels), tiled over the (T, T) plane.
# Write-only: sq_dists / eye are regenerated from iota in-kernel.
# ----------------------------------------------------------------------------
def _gp_kernel_kernel(ls_ref, la_ref, kmat_ref):
    k = pl.program_id(0)
    r = pl.program_id(1)
    c = pl.program_id(2)

    length_scale = jnp.abs(ls_ref[k]) + 1.0                   # min_length_scale = 1.0
    amplitude = jnp.exp(la_ref[k])
    amp2 = amplitude * amplitude
    neg_half_inv_ls2 = -0.5 / (length_scale * length_scale)   # hoisted scalar

    tr = kmat_ref.shape[1]
    tc = kmat_ref.shape[2]
    rows = r * tr + lax.broadcasted_iota(jnp.int32, (tr, tc), 0)
    cols = c * tc + lax.broadcasted_iota(jnp.int32, (tr, tc), 1)
    diff = (rows - cols).astype(jnp.float32)
    k_base = amp2 * jnp.exp((diff * diff) * neg_half_inv_ls2)
    kmat_ref[0] = k_base

    # jitter = 0.01 on the diagonal only; off-diagonal tiles skip the work.
    @pl.when(r == c)
    def _():
        eye = (rows == cols).astype(jnp.float32)
        kmat_ref[0] = k_base + (0.01 + amp2 * 0.001) * eye


# ----------------------------------------------------------------------------
# Wrapper: returns the same tuple as forward() plus the K_lambda/K_phi tensors.
# ----------------------------------------------------------------------------
@functools.partial(jax.jit, static_argnames=("t_tile", "n_tile"))
def aladyn_forward(lambda_, phi, length_scales, log_amplitudes, *, t_tile=None, n_tile=None):
    N, K, T = lambda_.shape
    K2, D, T2 = phi.shape
    assert K2 == K and T2 == T

    budget = _vmem_budget_bytes()
    if t_tile is None or n_tile is None:
        nt, tt = _fit_tiles(N, T, K, D, budget)
        if n_tile is None:
            n_tile = nt
        if t_tile is None:
            t_tile = tt
    assert T % t_tile == 0 and N % n_tile == 0

    # ---- phi_prob = sigmoid(phi), once ----------------------------------
    t_phi = _pick_tile(T, 512, 128)
    phi_prob = pl.pallas_call(
        _sigmoid_kernel,
        out_shape=jax.ShapeDtypeStruct((K, D, T), jnp.float32),
        grid=(T // t_phi,),
        in_specs=[pl.BlockSpec((K, D, t_phi), lambda ti: (0, 0, ti))],
        out_specs=pl.BlockSpec((K, D, t_phi), lambda ti: (0, 0, ti)),
        compiler_params=pltpu.CompilerParams(
            dimension_semantics=("parallel",),
            vmem_limit_bytes=budget,
        ),
        cost_estimate=pl.CostEstimate(
            flops=4 * K * D * T,
            transcendentals=K * D * T,
            bytes_accessed=2 * 4 * K * D * T,
        ),
    )(phi)

    # ---- fused softmax + mixture einsum ----------------------------------
    # Grid: (T tiles, N tiles); N innermost so the phi_prob block (which only
    # depends on the T tile) stays resident across consecutive N steps. All
    # outputs depend on both axes -> both axes "parallel" (megacore-splittable).
    grid = (T // t_tile, N // n_tile)
    pi, theta = pl.pallas_call(
        _forward_kernel,
        out_shape=(
            jax.ShapeDtypeStruct((N, D, T), jnp.float32),
            jax.ShapeDtypeStruct((N, K, T), jnp.float32),
        ),
        grid=grid,
        in_specs=[
            pl.BlockSpec((n_tile, K, t_tile), lambda ti, ni: (ni, 0, ti)),
            pl.BlockSpec((K, D, t_tile), lambda ti, ni: (0, 0, ti)),
        ],
        out_specs=(
            pl.BlockSpec((n_tile, D, t_tile), lambda ti, ni: (ni, 0, ti)),
            pl.BlockSpec((n_tile, K, t_tile), lambda ti, ni: (ni, 0, ti)),
        ),
        compiler_params=pltpu.CompilerParams(
            dimension_semantics=("parallel", "parallel"),
            vmem_limit_bytes=budget,
        ),
        cost_estimate=pl.CostEstimate(
            flops=2 * N * D * T * K + 6 * N * K * T,
            transcendentals=N * K * T,
            bytes_accessed=4 * (2 * N * K * T + K * D * T + N * D * T),
        ),
    )(lambda_, phi_prob)

    # ---- update_kernels() side effect ------------------------------------
    tt_gp = _pick_tile(T, 512, 128)
    k_lambda = pl.pallas_call(
        _gp_kernel_kernel,
        out_shape=jax.ShapeDtypeStruct((K, T, T), jnp.float32),
        grid=(K, T // tt_gp, T // tt_gp),
        in_specs=[
            pl.BlockSpec(memory_space=pltpu.SMEM),            # length_scales (K,)
            pl.BlockSpec(memory_space=pltpu.SMEM),            # log_amplitudes (K,)
        ],
        out_specs=pl.BlockSpec((1, tt_gp, tt_gp), lambda k, r, c: (k, r, c)),
        compiler_params=pltpu.CompilerParams(
            dimension_semantics=("parallel", "parallel", "parallel"),
            vmem_limit_bytes=budget,
        ),
        cost_estimate=pl.CostEstimate(
            flops=6 * K * T * T,
            transcendentals=K * T * T,
            bytes_accessed=4 * K * T * T,
        ),
    )(length_scales, log_amplitudes)
    # Reference does K_phi[k] = K_reg.clone(); under JAX immutability, aliasing
    # the same array is equivalent for forward(). NOTE: if a caller later wants
    # to update K_phi / K_lambda independently, materialize a copy instead.
    k_phi = k_lambda

    return (pi, theta, phi_prob), (k_lambda, k_phi)


# ----------------------------------------------------------------------------
# Pure-JAX reference for correctness checking
# ----------------------------------------------------------------------------
def _ref_forward(lambda_, phi, length_scales, log_amplitudes):
    m = jnp.max(lambda_, axis=1, keepdims=True)
    e = jnp.exp(lambda_ - m)
    theta = e / jnp.sum(e, axis=1, keepdims=True)
    phi_prob = 1.0 / (1.0 + jnp.exp(-phi))
    pi = jnp.einsum("nkt,kdt->ndt", theta, phi_prob)
    T = lambda_.shape[-1]
    times = jnp.arange(T, dtype=jnp.float32)
    sqd = (times[None, :] - times[:, None]) ** 2
    ls = jnp.abs(length_scales) + 1.0
    amp2 = jnp.exp(log_amplitudes) ** 2
    kmat = amp2[:, None, None] * jnp.exp(-0.5 * sqd[None] / (ls**2)[:, None, None])
    kmat = kmat + (0.01 + amp2 * 0.001)[:, None, None] * jnp.eye(T)[None]
    kmat = 0.5 * (kmat + jnp.swapaxes(kmat, -1, -2))          # exact no-op, kept for fidelity
    return (pi, theta, phi_prob), (kmat, kmat)


if __name__ == "__main__":
    # Small shapes consistent with the module: N patients, D diseases, T times,
    # K topics, P genetic covariates (gamma/G unused by forward()).
    N, D, T, K, P = 8, 16, 256, 4, 5

    key = jax.random.PRNGKey(0)
    k1, k2 = jax.random.split(key)

    # Deterministic parameter initialization (module __init__ shapes).
    # TODO(synk): the SVD / lstsq / Cholesky-sampled init of lambda_/phi is host-side
    # setup with no Pallas equivalent; replaced by deterministic Gaussian init.
    lambda_ = jax.random.normal(k1, (N, K, T), dtype=jnp.float32)
    phi = jax.random.normal(k2, (K, D, T), dtype=jnp.float32) - 2.0  # logit-prev-ish offset
    length_scales = jnp.full((K,), T / 10.0, dtype=jnp.float32)
    log_amplitudes = jnp.log(jnp.full((K,), 2.0, dtype=jnp.float32))

    (pi, theta, phi_prob), (k_lam, k_phi) = jax.block_until_ready(
        aladyn_forward(lambda_, phi, length_scales, log_amplitudes)
    )

    (pi_r, theta_r, phi_r), (k_lam_r, _) = _ref_forward(
        lambda_, phi, length_scales, log_amplitudes
    )

    np.testing.assert_allclose(np.asarray(pi), np.asarray(pi_r), rtol=1e-5, atol=1e-5)
    np.testing.assert_allclose(np.asarray(theta), np.asarray(theta_r), rtol=1e-5, atol=1e-5)
    np.testing.assert_allclose(np.asarray(phi_prob), np.asarray(phi_r), rtol=1e-5, atol=1e-5)
    np.testing.assert_allclose(np.asarray(k_lam), np.asarray(k_lam_r), rtol=1e-5, atol=1e-5)

    print("KERNEL_OK")
</pallas_src>

<mosaic_0001>
module attributes {stable_mosaic.version = 11 : i64} {
  func.func @_sigmoid_kernel(%arg0: i32, %arg1: memref<4x16x256xf32, #tpu.memory_space<vmem>>, %arg2: memref<4x16x256xf32, #tpu.memory_space<vmem>>) attributes {dimension_semantics = [#tpu.dimension_semantics<parallel>], iteration_bounds = array<i64: 1>, scalar_prefetch = 0 : i64, scratch_operands = 0 : i64, tpu.core_type = #tpu.core_type<tc>, window_params = [{transform_indices = @transform_0, window_bounds = array<i64: 4, 16, 256>}, {transform_indices = @transform_1, window_bounds = array<i64: 4, 16, 256>}]} {
    %c0 = arith.constant 0 : index
    %c0_0 = arith.constant 0 : index
    %c0_1 = arith.constant 0 : index
    %0 = vector.load %arg1[%c0, %c0_0, %c0_1] : memref<4x16x256xf32, #tpu.memory_space<vmem>>, vector<4x16x256xf32>
    %cst = arith.constant 0.000000e+00 : f32
    %1 = vector.broadcast %cst : f32 to vector<4x16x256xf32>
    %2 = arith.subf %1, %0 : vector<4x16x256xf32>
    %3 = math.exp %2 : vector<4x16x256xf32>
    %cst_2 = arith.constant 1.000000e+00 : f32
    %4 = vector.broadcast %cst_2 : f32 to vector<4x16x256xf32>
    %5 = arith.addf %4, %3 : vector<4x16x256xf32>
    %6 = tpu.reciprocal %5 : vector<4x16x256xf32> -> vector<4x16x256xf32>
    %c0_3 = arith.constant 0 : index
    %c0_4 = arith.constant 0 : index
    %c0_5 = arith.constant 0 : index
    %7 = vector.load %arg2[%c0_3, %c0_4, %c0_5] : memref<4x16x256xf32, #tpu.memory_space<vmem>>, vector<4x16x256xf32>
    tpu.vector_store %arg2[%c0_3, %c0_4, %c0_5], %6 {strides = array<i32>} : memref<4x16x256xf32, #tpu.memory_space<vmem>>, vector<4x16x256xf32>,
    return
  }
  func.func @transform_0(%arg0: i32) -> (i32, i32, i32) {
    %c0_i32 = arith.constant 0 : i32
    %c0_i32_0 = arith.constant 0 : i32
    %c0_i32_1 = arith.constant 0 : i32
    return %c0_i32, %c0_i32_0, %arg0 : i32, i32, i32
  }
  func.func @transform_1(%arg0: i32) -> (i32, i32, i32) {
    %c0_i32 = arith.constant 0 : i32
    %c0_i32_0 = arith.constant 0 : i32
    %c0_i32_1 = arith.constant 0 : i32
    return %c0_i32, %c0_i32_0, %arg0 : i32, i32, i32
  }
}

module attributes {stable_mosaic.version = 11 : i64} {
  func.func @_forward_kernel(%arg0: i32, %arg1: i32, %arg2: memref<8x4x128xf32, #tpu.memory_space<vmem>>, %arg3: memref<4x16x128xf32, #tpu.memory_space<vmem>>, %arg4: memref<8x16x128xf32, #tpu.memory_space<vmem>>, %arg5: memref<8x4x128xf32, #tpu.memory_space<vmem>>) attributes {dimension_semantics = [#tpu.dimension_semantics<parallel>, #tpu.dimension_semantics<parallel>], iteration_bounds = array<i64: 2, 1>, scalar_prefetch = 0 : i64, scratch_operands = 0 : i64, tpu.core_type = #tpu.core_type<tc>, window_params = [{transform_indices = @transform_0, window_bounds = array<i64: 8, 4, 128>}, {transform_indices = @transform_1, window_bounds = array<i64: 4, 16, 128>}, {transform_indices = @transform_2, window_bounds = array<i64: 8, 16, 128>}, {transform_indices = @transform_3, window_bounds = array<i64: 8, 4, 128>}]} {
    %c0 = arith.constant 0 : index
    %c0_0 = arith.constant 0 : index
    %c0_1 = arith.constant 0 : index
    %0 = vector.load %arg2[%c0, %c0_0, %c0_1] : memref<8x4x128xf32, #tpu.memory_space<vmem>>, vector<8x4x128xf32>
    %cst = arith.constant dense<0xFF800000> : vector<8x128xf32>
    %1 = vector.multi_reduction <maximumf>, %0, %cst [1] : vector<8x4x128xf32> to vector<8x128xf32>
    %2 = vector.shape_cast %1 : vector<8x128xf32> to vector<8x1x128xf32>
    %3 = vector.broadcast %2 : vector<8x1x128xf32> to vector<8x4x128xf32>
    %4 = arith.subf %0, %3 : vector<8x4x128xf32>
    %5 = math.exp %4 : vector<8x4x128xf32>
    %cst_2 = arith.constant dense<0.000000e+00> : vector<8x128xf32>
    %6 = vector.multi_reduction <add>, %5, %cst_2 [1] : vector<8x4x128xf32> to vector<8x128xf32>
    %7 = vector.shape_cast %6 : vector<8x128xf32> to vector<8x1x128xf32>
    %8 = tpu.reciprocal %7 : vector<8x1x128xf32> -> vector<8x1x128xf32>
    %9 = vector.broadcast %8 : vector<8x1x128xf32> to vector<8x4x128xf32>
    %10 = arith.mulf %5, %9 : vector<8x4x128xf32>
    %c0_3 = arith.constant 0 : index
    %c0_4 = arith.constant 0 : index
    %c0_5 = arith.constant 0 : index
    %11 = vector.load %arg5[%c0_3, %c0_4, %c0_5] : memref<8x4x128xf32, #tpu.memory_space<vmem>>, vector<8x4x128xf32>
    tpu.vector_store %arg5[%c0_3, %c0_4, %c0_5], %10 {strides = array<i32>} : memref<8x4x128xf32, #tpu.memory_space<vmem>>, vector<8x4x128xf32>,
    %c0_6 = arith.constant 0 : index
    %c0_7 = arith.constant 0 : index
    %c0_8 = arith.constant 0 : index
    %12 = vector.load %arg3[%c0_6, %c0_7, %c0_8] : memref<4x16x128xf32, #tpu.memory_space<vmem>>, vector<4x16x128xf32>
    %13 = vector.extract_strided_slice %10 {offsets = [0, 0, 0], sizes = [8, 1, 128], strides = [1, 1, 1]} : vector<8x4x128xf32> to vector<8x1x128xf32>
    %14 = vector.extract_strided_slice %12 {offsets = [0, 0, 0], sizes = [1, 16, 128], strides = [1, 1, 1]} : vector<4x16x128xf32> to vector<1x16x128xf32>
    %15 = vector.shape_cast %14 : vector<1x16x128xf32> to vector<16x128xf32>
    %16 = vector.shape_cast %15 : vector<16x128xf32> to vector<1x16x128xf32>
    %17 = vector.broadcast %13 : vector<8x1x128xf32> to vector<8x16x128xf32>
    %18 = vector.broadcast %16 : vector<1x16x128xf32> to vector<8x16x128xf32>
    %19 = arith.mulf %17, %18 : vector<8x16x128xf32>
    %20 = vector.extract_strided_slice %10 {offsets = [0, 1, 0], sizes = [8, 1, 128], strides = [1, 1, 1]} : vector<8x4x128xf32> to vector<8x1x128xf32>
    %21 = vector.extract_strided_slice %12 {offsets = [1, 0, 0], sizes = [1, 16, 128], strides = [1, 1, 1]} : vector<4x16x128xf32> to vector<1x16x128xf32>
    %22 = vector.shape_cast %21 : vector<1x16x128xf32> to vector<16x128xf32>
    %23 = vector.shape_cast %22 : vector<16x128xf32> to vector<1x16x128xf32>
    %24 = vector.broadcast %20 : vector<8x1x128xf32> to vector<8x16x128xf32>
    %25 = vector.broadcast %23 : vector<1x16x128xf32> to vector<8x16x128xf32>
    %26 = arith.mulf %24, %25 : vector<8x16x128xf32>
    %27 = arith.addf %19, %26 : vector<8x16x128xf32>
    %28 = vector.extract_strided_slice %10 {offsets = [0, 2, 0], sizes = [8, 1, 128], strides = [1, 1, 1]} : vector<8x4x128xf32> to vector<8x1x128xf32>
    %29 = vector.extract_strided_slice %12 {offsets = [2, 0, 0], sizes = [1, 16, 128], strides = [1, 1, 1]} : vector<4x16x128xf32> to vector<1x16x128xf32>
    %30 = vector.shape_cast %29 : vector<1x16x128xf32> to vector<16x128xf32>
    %31 = vector.shape_cast %30 : vector<16x128xf32> to vector<1x16x128xf32>
    %32 = vector.broadcast %28 : vector<8x1x128xf32> to vector<8x16x128xf32>
    %33 = vector.broadcast %31 : vector<1x16x128xf32> to vector<8x16x128xf32>
    %34 = arith.mulf %32, %33 : vector<8x16x128xf32>
    %35 = arith.addf %27, %34 : vector<8x16x128xf32>
    %36 = vector.extract_strided_slice %10 {offsets = [0, 3, 0], sizes = [8, 1, 128], strides = [1, 1, 1]} : vector<8x4x128xf32> to vector<8x1x128xf32>
    %37 = vector.extract_strided_slice %12 {offsets = [3, 0, 0], sizes = [1, 16, 128], strides = [1, 1, 1]} : vector<4x16x128xf32> to vector<1x16x128xf32>
    %38 = vector.shape_cast %37 : vector<1x16x128xf32> to vector<16x128xf32>
    %39 = vector.shape_cast %38 : vector<16x128xf32> to vector<1x16x128xf32>
    %40 = vector.broadcast %36 : vector<8x1x128xf32> to vector<8x16x128xf32>
    %41 = vector.broadcast %39 : vector<1x16x128xf32> to vector<8x16x128xf32>
    %42 = arith.mulf %40, %41 : vector<8x16x128xf32>
    %43 = arith.addf %35, %42 : vector<8x16x128xf32>
    %c0_9 = arith.constant 0 : index
    %c0_10 = arith.constant 0 : index
    %c0_11 = arith.constant 0 : index
    %44 = vector.load %arg4[%c0_9, %c0_10, %c0_11] : memref<8x16x128xf32, #tpu.memory_space<vmem>>, vector<8x16x128xf32>
    tpu.vector_store %arg4[%c0_9, %c0_10, %c0_11], %43 {strides = array<i32>} : memref<8x16x128xf32, #tpu.memory_space<vmem>>, vector<8x16x128xf32>,
    return
  }
  func.func @transform_0(%arg0: i32, %arg1: i32) -> (i32, i32, i32) {
    %c0_i32 = arith.constant 0 : i32
    %c0_i32_0 = arith.constant 0 : i32
    return %arg1, %c0_i32, %arg0 : i32, i32, i32
  }
  func.func @transform_1(%arg0: i32, %arg1: i32) -> (i32, i32, i32) {
    %c0_i32 = arith.constant 0 : i32
    %c0_i32_0 = arith.constant 0 : i32
    %c0_i32_1 = arith.constant 0 : i32
    return %c0_i32, %c0_i32_0, %arg0 : i32, i32, i32
  }
  func.func @transform_2(%arg0: i32, %arg1: i32) -> (i32, i32, i32) {
    %c0_i32 = arith.constant 0 : i32
    %c0_i32_0 = arith.constant 0 : i32
    return %arg1, %c0_i32, %arg0 : i32, i32, i32
  }
  func.func @transform_3(%arg0: i32, %arg1: i32) -> (i32, i32, i32) {
    %c0_i32 = arith.constant 0 : i32
    %c0_i32_0 = arith.constant 0 : i32
    return %arg1, %c0_i32, %arg0 : i32, i32, i32
  }
}

module attributes {stable_mosaic.version = 11 : i64} {
  func.func @_gp_kernel_kernel(%arg0: i32, %arg1: i32, %arg2: i32, %arg3: memref<4xf32, #tpu.memory_space<smem>>, %arg4: memref<4xf32, #tpu.memory_space<smem>>, %arg5: memref<1x256x256xf32, #tpu.memory_space<vmem>>) attributes {dimension_semantics = [#tpu.dimension_semantics<parallel>, #tpu.dimension_semantics<parallel>, #tpu.dimension_semantics<parallel>], iteration_bounds = array<i64: 4, 1, 1>, scalar_prefetch = 0 : i64, scratch_operands = 0 : i64, tpu.core_type = #tpu.core_type<tc>, window_params = [{transform_indices = @transform_0, window_bounds = array<i64: 4>}, {transform_indices = @transform_1, window_bounds = array<i64: 4>}, {transform_indices = @transform_2, window_bounds = array<i64: 1, 256, 256>}]} {
    %0 = arith.index_cast %arg0 : i32 to index
    %1 = memref.load %arg3[%0] : memref<4xf32, #tpu.memory_space<smem>>
    %2 = math.absf %1 : f32
    %cst = arith.constant 1.000000e+00 : f32
    %3 = arith.addf %2, %cst : f32
    %4 = arith.index_cast %arg0 : i32 to index
    %5 = memref.load %arg4[%4] : memref<4xf32, #tpu.memory_space<smem>>
    %6 = math.exp %5 : f32
    %7 = arith.mulf %6, %6 : f32
    %8 = arith.mulf %3, %3 : f32
    %cst_0 = arith.constant -5.000000e-01 : f32
    %9 = arith.divf %cst_0, %8 : f32
    %c256_i32 = arith.constant 256 : i32
    %10 = arith.muli %arg1, %c256_i32 : i32
    %11 = tpu.iota {dimensions = array<i32: 0>} : vector<256x256xi32>
    %12 = vector.broadcast %10 : i32 to vector<256x256xi32>
    %13 = arith.addi %12, %11 : vector<256x256xi32>
    %c256_i32_1 = arith.constant 256 : i32
    %14 = arith.muli %arg2, %c256_i32_1 : i32
    %15 = tpu.iota {dimensions = array<i32: 1>} : vector<256x256xi32>
    %16 = vector.broadcast %14 : i32 to vector<256x256xi32>
    %17 = arith.addi %16, %15 : vector<256x256xi32>
    %18 = arith.subi %13, %17 : vector<256x256xi32>
    %19 = arith.sitofp %18 : vector<256x256xi32> to vector<256x256xf32>
    %20 = arith.mulf %19, %19 : vector<256x256xf32>
    %21 = vector.broadcast %9 : f32 to vector<256x256xf32>
    %22 = arith.mulf %20, %21 : vector<256x256xf32>
    %23 = math.exp %22 : vector<256x256xf32>
    %24 = vector.broadcast %7 : f32 to vector<256x256xf32>
    %25 = arith.mulf %24, %23 : vector<256x256xf32>
    %c0 = arith.constant 0 : index
    %c0_2 = arith.constant 0 : index
    %c0_3 = arith.constant 0 : index
    %26 = vector.load %arg5[%c0, %c0_2, %c0_3] : memref<1x256x256xf32, #tpu.memory_space<vmem>>, vector<1x256x256xf32>
    %27 = vector.shape_cast %26 : vector<1x256x256xf32> to vector<256x256xf32>
    %28 = vector.shape_cast %25 : vector<256x256xf32> to vector<1x256x256xf32>
    tpu.vector_store %arg5[%c0, %c0_2, %c0_3], %28 {strides = array<i32>} : memref<1x256x256xf32, #tpu.memory_space<vmem>>, vector<1x256x256xf32>,
    %29 = arith.cmpi eq, %arg1, %arg2 : i32
    %30 = arith.extui %29 : i1 to i32
    %c0_i32 = arith.constant 0 : i32
    %31 = arith.cmpi ne, %30, %c0_i32 : i32
    scf.if %31 {
      %32 = arith.cmpi eq, %13, %17 : vector<256x256xi32>
      %33 = arith.extui %32 : vector<256x256xi1> to vector<256x256xi32>
      %34 = arith.sitofp %33 : vector<256x256xi32> to vector<256x256xf32>
      %cst_4 = arith.constant 1.000000e-03 : f32
      %35 = arith.mulf %7, %cst_4 : f32
      %cst_5 = arith.constant 0.00999999977 : f32
      %36 = arith.addf %cst_5, %35 : f32
      %37 = vector.broadcast %36 : f32 to vector<256x256xf32>
      %38 = arith.mulf %37, %34 : vector<256x256xf32>
      %39 = arith.addf %25, %38 : vector<256x256xf32>
      %c0_6 = arith.constant 0 : index
      %c0_7 = arith.constant 0 : index
      %c0_8 = arith.constant 0 : index
      %40 = vector.load %arg5[%c0_6, %c0_7, %c0_8] : memref<1x256x256xf32, #tpu.memory_space<vmem>>, vector<1x256x256xf32>
      %41 = vector.shape_cast %40 : vector<1x256x256xf32> to vector<256x256xf32>
      %42 = vector.shape_cast %39 : vector<256x256xf32> to vector<1x256x256xf32>
      tpu.vector_store %arg5[%c0_6, %c0_7, %c0_8], %42 {strides = array<i32>} : memref<1x256x256xf32, #tpu.memory_space<vmem>>, vector<1x256x256xf32>,
    } else {
    }
    return
  }
  func.func @transform_0(%arg0: i32, %arg1: i32, %arg2: i32) -> i32 {
    %c0_i32 = arith.constant 0 : i32
    %c0_i32_0 = arith.constant 0 : i32
    return %c0_i32 : i32
  }
  func.func @transform_1(%arg0: i32, %arg1: i32, %arg2: i32) -> i32 {
    %c0_i32 = arith.constant 0 : i32
    %c0_i32_0 = arith.constant 0 : i32
    return %c0_i32 : i32
  }
  func.func @transform_2(%arg0: i32, %arg1: i32, %arg2: i32) -> (i32, i32, i32) {
    %c0_i32 = arith.constant 0 : i32
    return %arg0, %arg1, %arg2 : i32, i32, i32
  }
}

</mosaic_0001>

<llo_original>
// kernel: aladyn_forward.3
$region0: #{aladyn_forward.3}
  #allocation0 [shape = 'u32[]', space=smem, size = 0x4, offset = 0x4, fixed_abs, tag = 'smem constant byte address 0x4 - core index']
  #allocation1 [shape = 'u32[144,128]{1,0:T(1,128)}', space=vmem, size = 0x12000, scoped, tag = 'internal scratch']
  %s0 = inlined_call_operand.hbm [shape: f32[4,16,256], index: 0, kind: input, shape index: {}]
  %s1 = inlined_call_operand.vmem [shape: f32[4,16,256], index: 1, kind: output, shape index: {}]
  %s2 = sld [smem:[#allocation0]]
  $region18: #{aladyn_forward.3} parent=0
    _
  %s4 = ssub.s32 1, %s2
  %s5 = scalar_select 0, %s4, %s2
  $region1: #{aladyn_forward.3} parent=0
    #allocation2 [shape = 'u8[65536]{0}', space=vmem, size = 0x10000, scoped, tag = 'input window, operand 0, single buffered']
    #allocation3 [shape = 's32[1]{0}', space=sflag, size = 0x4, scoped, tag = 'scoped memory for aladyn_forward.3']
    %6 = vsyncpa [#allocation3], 0
    // Predicated region
    $region2: #{aladyn_forward.3} parent=1 // pred_check
      _
    $region3: #{aladyn_forward.3} parent=1 // pred_check_branch
      %8 = sbr.rel (0) target = $region5
    $region4: #{aladyn_forward.3} parent=1 // pred_region
      %s10 = ssub.s32 2048, 2048
      %11 = vsyncadd [#allocation3], %s10
      %s12 = sshll.u32 [#allocation2], 4
      %s13 = int_to_ptr.vmem [resolvable:$true] %s12
      %18 = dma.hbm_to_vmem [thread:$0]  %s0, 2048, %s13, [#allocation3], 256, 256, 16
    $region5: #{aladyn_forward.3} parent=1 // pred_fallthru
      _
    // Predicated region
    $region6: #{aladyn_forward.3} parent=1 // pred_check
      _
    $region7: #{aladyn_forward.3} parent=1 // pred_check_branch
      %20 = sbr.rel (0) target = $region9
    $region8: #{aladyn_forward.3} parent=1 // pred_region
      %21 = dma.done [#allocation3], 2048
    $region9: #{aladyn_forward.3} parent=1 // pred_fallthru
      _
    %v22 = vld [vmem:[#allocation2] sm:$0xff]
    %v23 = vld [vmem:[#allocation2 + $0x8] sm:$0xff]
    %v24 = vld [vmem:[#allocation2 + $0x10] sm:$0xff]
    %v25 = vld [vmem:[#allocation2 + $0x18] sm:$0xff]
    %v26 = vld [vmem:[#allocation2 + $0x20] sm:$0xff]
    %v27 = vld [vmem:[#allocation2 + $0x28] sm:$0xff]
    %v28 = vld [vmem:[#allocation2 + $0x30] sm:$0xff]
    %v29 = vld [vmem:[#allocation2 + $0x38] sm:$0xff]
    %v30 = vld [vmem:[#allocation2 + $0x40] sm:$0xff]
    %v31 = vld [vmem:[#allocation2 + $0x48] sm:$0xff]
    %v32 = vld [vmem:[#allocation2 + $0x50] sm:$0xff]
    %v33 = vld [vmem:[#allocation2 + $0x58] sm:$0xff]
    %v34 = vld [vmem:[#allocation2 + $0x60] sm:$0xff]
    %v35 = vld [vmem:[#allocation2 + $0x68] sm:$0xff]
    %v36 = vld [vmem:[#allocation2 + $0x70] sm:$0xff]
    %v37 = vld [vmem:[#allocation2 + $0x78] sm:$0xff]
    %v38 = vsub.f32 0.0, %v22
    %v39 = vsub.f32 0.0, %v23
    %v40 = vsub.f32 0.0, %v24
    %v41 = vsub.f32 0.0, %v25
    %v42 = vsub.f32 0.0, %v26
    %v43 = vsub.f32 0.0, %v27
    %v44 = vsub.f32 0.0, %v28
    %v45 = vsub.f32 0.0, %v29
    %v46 = vsub.f32 0.0, %v30
    %v47 = vsub.f32 0.0, %v31
    %v48 = vsub.f32 0.0, %v32
    %v49 = vsub.f32 0.0, %v33
    %v50 = vsub.f32 0.0, %v34
    %v51 = vsub.f32 0.0, %v35
    %v52 = vsub.f32 0.0, %v36
    %v53 = vsub.f32 0.0, %v37
    %v54 = vmul.f32 %v38, 1.442695
    %v55 = vpow.pop %v54
    %v56 = vmul.f32 %v39, 1.442695
    %v57 = vpow.pop %v56
    %v58 = vmul.f32 %v40, 1.442695
    %v59 = vpow.pop %v58
    %v60 = vmul.f32 %v41, 1.442695
    %v61 = vpow.pop %v60
    %v62 = vmul.f32 %v42, 1.442695
    %v63 = vpow.pop %v62
    %v64 = vmul.f32 %v43, 1.442695
    %v65 = vpow.pop %v64
    %v66 = vmul.f32 %v44, 1.442695
    %v67 = vpow.pop %v66
    %v68 = vmul.f32 %v45, 1.442695
    %v69 = vpow.pop %v68
    %v70 = vmul.f32 %v46, 1.442695
    %v71 = vpow.pop %v70
    %v72 = vmul.f32 %v47, 1.442695
    %v73 = vpow.pop %v72
    %v74 = vmul.f32 %v48, 1.442695
    %v75 = vpow.pop %v74
    %v76 = vmul.f32 %v49, 1.442695
    %v77 = vpow.pop %v76
    %v78 = vmul.f32 %v50, 1.442695
    %v79 = vpow.pop %v78
    %v80 = vmul.f32 %v51, 1.442695
    %v81 = vpow.pop %v80
    %v82 = vmul.f32 %v52, 1.442695
    %v83 = vpow.pop %v82
    %v84 = vmul.f32 %v53, 1.442695
    %v85 = vpow.pop %v84
    %v86 = vadd.f32 %v55, 1.0
    %v87 = vadd.f32 %v57, 1.0
    %v88 = vadd.f32 %v59, 1.0
    %v89 = vadd.f32 %v61, 1.0
    %v90 = vadd.f32 %v63, 1.0
    %v91 = vadd.f32 %v65, 1.0
    %v92 = vadd.f32 %v67, 1.0
    %v93 = vadd.f32 %v69, 1.0
    %v94 = vadd.f32 %v71, 1.0
    %v95 = vadd.f32 %v73, 1.0
    %v96 = vadd.f32 %v75, 1.0
    %v97 = vadd.f32 %v77, 1.0
    %v98 = vadd.f32 %v79, 1.0
    %v99 = vadd.f32 %v81, 1.0
    %v100 = vadd.f32 %v83, 1.0
    %v101 = vadd.f32 %v85, 1.0
    %v102 = vrcp.pop %v86
    %v103 = vrcp.pop %v87
    %v104 = vrcp.pop %v88
    %v105 = vrcp.pop %v89
    %v106 = vrcp.pop %v90
    %v107 = vrcp.pop %v91
    %v108 = vrcp.pop %v92
    %v109 = vrcp.pop %v93
    %v110 = vrcp.pop %v94
    %v111 = vrcp.pop %v95
    %v112 = vrcp.pop %v96
    %v113 = vrcp.pop %v97
    %v114 = vrcp.pop %v98
    %v115 = vrcp.pop %v99
    %v116 = vrcp.pop %v100
    %v117 = vrcp.pop %v101
    %118 = vst [vmem:[%s1] sm:$0xff] %v102
    %119 = vst [vmem:[%s1 + $0x8] sm:$0xff] %v103
    %120 = vst [vmem:[%s1 + $0x10] sm:$0xff] %v104
    %121 = vst [vmem:[%s1 + $0x18] sm:$0xff] %v105
    %122 = vst [vmem:[%s1 + $0x20] sm:$0xff] %v106
    %123 = vst [vmem:[%s1 + $0x28] sm:$0xff] %v107
    %124 = vst [vmem:[%s1 + $0x30] sm:$0xff] %v108
    %125 = vst [vmem:[%s1 + $0x38] sm:$0xff] %v109
    %126 = vst [vmem:[%s1 + $0x40] sm:$0xff] %v110
    %127 = vst [vmem:[%s1 + $0x48] sm:$0xff] %v111
    %128 = vst [vmem:[%s1 + $0x50] sm:$0xff] %v112
    %129 = vst [vmem:[%s1 + $0x58] sm:$0xff] %v113
    %130 = vst [vmem:[%s1 + $0x60] sm:$0xff] %v114
    %131 = vst [vmem:[%s1 + $0x68] sm:$0xff] %v115
    %132 = vst [vmem:[%s1 + $0x70] sm:$0xff] %v116
    %133 = vst [vmem:[%s1 + $0x78] sm:$0xff] %v117
    // Predicated region
    $region10: #{aladyn_forward.3} parent=1 // pred_check
      _
    $region11: #{aladyn_forward.3} parent=1 // pred_check_branch
      %135 = sbr.rel (0) target = $region13
    $region12: #{aladyn_forward.3} parent=1 // pred_region
      _
    $region13: #{aladyn_forward.3} parent=1 // pred_fallthru
      _
    // Predicated region
    $region14: #{aladyn_forward.3} parent=1 // pred_check
      _
    $region15: #{aladyn_forward.3} parent=1 // pred_check_branch
      %137 = sbr.rel (0) target = $region17
    $region16: #{aladyn_forward.3} parent=1 // pred_region
      _
    $region17: #{aladyn_forward.3} parent=1 // pred_fallthru
      _
    %138 = vsyncpa [#allocation3], 1

// kernel: aladyn_forward.4
$region0: #{aladyn_forward.4}
  #allocation0 [shape = 'u32[]', space=smem, size = 0x4, offset = 0x4, fixed_abs, tag = 'smem constant byte address 0x4 - core index']
  #allocation1 [shape = 'u32[144,128]{1,0:T(1,128)}', space=vmem, size = 0x12000, scoped, tag = 'internal scratch']
  %s0 = inlined_call_operand.vmem [shape: f32[8,4,256], index: 0, kind: input, shape index: {}]
  %s1 = inlined_call_operand.vmem [shape: f32[4,16,256], index: 1, kind: input, shape index: {}]
  %s2 = inlined_call_operand.hbm [shape: f32[8,16,256], index: 2, kind: output, shape index: {0}]
  %s3 = inlined_call_operand.hbm [shape: f32[8,4,256], index: 3, kind: output, shape index: {1}]
  %4 = xla_tuple %s2, %s3
  %s5 = sld [smem:[#allocation0]]
  $region128: #{aladyn_forward.4} parent=0
    _
  %s7 = ssub.s32 1, %s5
  %s8 = scalar_select 0, %s7, %s5
  $region1: #{aladyn_forward.4} parent=0
    #allocation2 [shape = 'u8[32768]{0}', space=vmem, size = 0x8000, scoped, tag = 'input window, operand 0']
    #allocation3 [shape = 'u8[65536]{0}', space=vmem, size = 0x10000, scoped, tag = 'input window, operand 1']
    #allocation4 [shape = 'u8[131072]{0}', space=vmem, size = 0x20000, scoped, tag = 'output window, operand 0']
    #allocation5 [shape = 's32[2]{0}', space=sflag, size = 0x8, scoped, tag = 'scoped memory for aladyn_forward.4']
    #allocation6 [shape = 'u8[32768]{0}', space=vmem, size = 0x8000, scoped, tag = 'output window, operand 1']
    #allocation7 [shape = 's32[2]{0}', space=sflag, size = 0x8, scoped, tag = 'scoped memory for aladyn_forward.4']
    %9 = vsyncpa [#allocation5], 0
    %s10 = scalar_lea.sflag [#allocation5], 1
    %11 = vsyncpa %s10, 0
    %12 = vsyncpa [#allocation7], 0
    %s13 = scalar_lea.sflag [#allocation7], 1
    %14 = vsyncpa %s13, 0
    loop: start=0, step=1, limit=4
    $region2: #{aladyn_forward.4} parent=1 // loop_pre_header
      _
    $region3: #{aladyn_forward.4} parent=1 // loop_header
      %s16 = sphi 0, %s20
      %p17 = scmp.ge.s32.totalorder %s16, 4
      %s23 = sphi 0, %s35
      %s24 = sphi 0, %s31
      %s25 = sphi 0, %s23
      %s26 = sphi 0, %s24
      %s27 = sphi 0, %s25
      %s28 = sphi 0, %s26
      %s40 = sphi 0, %s42
      %s43 = sphi 0, %s40
      %s44 = sphi 0, %s43
      %s60 = sphi 0, %s44
      %s66 = sphi 0, %s68
      %s69 = sphi 0, %s66
      %s70 = sphi 0, %s69
      %s86 = sphi 0, %s70
      %s94 = sphi 0, %s96
      %s97 = sphi 0, %s94
      %s98 = sphi 0, %s97
      %s114 = sphi 0, %s98
      %s122 = sphi 0, %s124
      %s125 = sphi 0, %s122
      %s126 = sphi 0, %s125
      %s142 = sphi 0, %s126
    $region4: #{aladyn_forward.4} parent=1 // loop_header_branch
      %19 = sbr.rel (%p17) target = $region8
    $region5: #{aladyn_forward.4} parent=1 // loop_body
      %s21 = ssub.s32 %s16, 1
      %s22 = ssub.s32 %s16, 2
      %s29 = sadd.s32 1, %s24
      %p30 = scmp.ge.s32.totalorder %s29, 1
      %s31 = scalar_select %p30, 0, %s29
      %s32 = sadd.s32 1, %s23
      %s33 = scalar_select %p30, %s32, %s23
      %p34 = scmp.ge.s32.totalorder %s33, 2
      %s35 = scalar_select %p34, 0, %s33
      %s36 = ssub.s32 %s24, %s31
      %s37 = ssub.s32 %s23, %s35
      %s38 = sor.u32 %s36, %s37
      %p39 = scmp.eq.s32.totalorder %s38, 0
      %s41 = sadd.s32 %s40, 1
      %s42 = scalar_select %p39, %s40, %s41
      %p45 = pneg %p39
      %p46 = scmp.eq.s32.totalorder %s16, 1
      %p47 = por %p45, %p46
      %p48 = scmp.ne.s32.totalorder %s40, %s43
      %p49 = scmp.eq.s32.totalorder %s16, 0
      %p50 = por %p48, %p49
      %p51 = scmp.ne.s32.totalorder %s40, %s43
      %p52 = scmp.eq.s32.totalorder %s21, 1
      %p53 = por %p51, %p52
      %p54 = scmp.ne.s32.totalorder %s43, %s44
      %p55 = scmp.eq.s32.totalorder %s21, 0
      %p56 = por %p54, %p55
      %p57 = scmp.ne.s32.totalorder %s43, %s44
      %p58 = scmp.eq.s32.totalorder %s22, 1
      %p59 = por %p57, %p58
      %p61 = scmp.ne.s32.totalorder %s44, %s60
      %p62 = scmp.eq.s32.totalorder %s22, 0
      %p63 = por %p61, %p62
      %s64 = ssub.s32 %s23, %s35
      %p65 = scmp.eq.s32.totalorder %s64, 0
      %s67 = sadd.s32 %s66, 1
      %s68 = scalar_select %p65, %s66, %s67
      %p71 = pneg %p65
      %p72 = scmp.eq.s32.totalorder %s16, 1
      %p73 = por %p71, %p72
      %p74 = scmp.ne.s32.totalorder %s66, %s69
      %p75 = scmp.eq.s32.totalorder %s16, 0
      %p76 = por %p74, %p75
      %p77 = scmp.ne.s32.totalorder %s66, %s69
      %p78 = scmp.eq.s32.totalorder %s21, 1
      %p79 = por %p77, %p78
      %p80 = scmp.ne.s32.totalorder %s69, %s70
      %p81 = scmp.eq.s32.totalorder %s21, 0
      %p82 = por %p80, %p81
      %p83 = scmp.ne.s32.totalorder %s69, %s70
      %p84 = scmp.eq.s32.totalorder %s22, 1
      %p85 = por %p83, %p84
      %p87 = scmp.ne.s32.totalorder %s70, %s86
      %p88 = scmp.eq.s32.totalorder %s22, 0
      %p89 = por %p87, %p88
      %s90 = ssub.s32 %s24, %s31
      %s91 = ssub.s32 %s23, %s35
      %s92 = sor.u32 %s90, %s91
      %p93 = scmp.eq.s32.totalorder %s92, 0
      %s95 = sadd.s32 %s94, 1
      %s96 = scalar_select %p93, %s94, %s95
      %p99 = pneg %p93
      %p100 = scmp.eq.s32.totalorder %s16, 1
      %p101 = por %p99, %p100
      %p102 = scmp.ne.s32.totalorder %s94, %s97
      %p103 = scmp.eq.s32.totalorder %s16, 0
      %p104 = por %p102, %p103
      %p105 = scmp.ne.s32.totalorder %s94, %s97
      %p106 = scmp.eq.s32.totalorder %s21, 1
      %p107 = por %p105, %p106
      %p108 = scmp.ne.s32.totalorder %s97, %s98
      %p109 = scmp.eq.s32.totalorder %s21, 0
      %p110 = por %p108, %p109
      %p111 = scmp.ne.s32.totalorder %s97, %s98
      %p112 = scmp.eq.s32.totalorder %s22, 1
      %p113 = por %p111, %p112
      %p115 = scmp.ne.s32.totalorder %s98, %s114
      %p116 = scmp.eq.s32.totalorder %s22, 0
      %p117 = por %p115, %p116
      %s118 = ssub.s32 %s24, %s31
      %s119 = ssub.s32 %s23, %s35
      %s120 = sor.u32 %s118, %s119
      %p121 = scmp.eq.s32.totalorder %s120, 0
      %s123 = sadd.s32 %s122, 1
      %s124 = scalar_select %p121, %s122, %s123
      %p127 = pneg %p121
      %p128 = scmp.eq.s32.totalorder %s16, 1
      %p129 = por %p127, %p128
      %p130 = scmp.ne.s32.totalorder %s122, %s125
      %p131 = scmp.eq.s32.totalorder %s16, 0
      %p132 = por %p130, %p131
      %p133 = scmp.ne.s32.totalorder %s122, %s125
      %p134 = scmp.eq.s32.totalorder %s21, 1
      %p135 = por %p133, %p134
      %p136 = scmp.ne.s32.totalorder %s125, %s126
      %p137 = scmp.eq.s32.totalorder %s21, 0
      %p138 = por %p136, %p137
      %p139 = scmp.ne.s32.totalorder %s125, %s126
      %p140 = scmp.eq.s32.totalorder %s22, 1
      %p141 = por %p139, %p140
      %p143 = scmp.ne.s32.totalorder %s126, %s142
      %p144 = scmp.eq.s32.totalorder %s22, 0
      %p145 = por %p143, %p144
      %p146 = scmp.le.s32.totalorder 1, %s16
      %p147 = scmp.lt.s32.totalorder %s16, 3
      %p148 = pnand %p146, %p147
      %p149 = pneg %p148
      // Predicated region
      $region9: #{aladyn_forward.4} parent=5 // pred_check
        _
      $region10: #{aladyn_forward.4} parent=5 // pred_check_branch
        %151 = sbr.rel (%p148) target = $region12
      $region11: #{aladyn_forward.4} parent=5 // pred_region
        %s152 = ssub.s32 %s16, 1
      $region12: #{aladyn_forward.4} parent=5 // pred_fallthru
        _
      %p153 = scmp.lt.s32.totalorder %s16, 2
      // Predicated region
      $region13: #{aladyn_forward.4} parent=5 // pred_check
        %p154 = pneg %p153
      $region14: #{aladyn_forward.4} parent=5 // pred_check_branch
        %156 = sbr.rel (%p154) target = $region16
      $region15: #{aladyn_forward.4} parent=5 // pred_region
        // Predicated region
        $region17: #{aladyn_forward.4} parent=15 // pred_check
          %p157 = pneg %p50
        $region18: #{aladyn_forward.4} parent=15 // pred_check_branch
          %159 = sbr.rel (%p157) target = $region20
        $region19: #{aladyn_forward.4} parent=15 // pred_region
          %s160 = sand.u32 %s40, 1
          %s161 = sand.u32 %s40, 1
          %s162 = smul.addr %s161, 32
          %s163 = scalar_lea.vmem [#allocation2], %s162
          %s164 = smul.u32 8, %s24
          %s165 = smul.addr %s164, 2
          %s166 = sadd.s32 %s23, %s165
          %s167 = smul.addr %s166, 4
          %s168 = scalar_lea.vmem %s0, %s167
          // Predicated region
          $region21: #{aladyn_forward.4} parent=19 // pred_check
            _
          $region22: #{aladyn_forward.4} parent=19 // pred_check_branch
            %170 = sbr.rel (0) target = $region24
          $region23: #{aladyn_forward.4} parent=19 // pred_region
            // Predicated region
            $region25: #{aladyn_forward.4} parent=23 // pred_check
              _
            $region26: #{aladyn_forward.4} parent=23 // pred_check_branch
              %172 = sbr.rel target = $region28
            $region27: #{aladyn_forward.4} parent=23 // pred_region
              // Predicated region
              $region40: #{aladyn_forward.4} parent=27 // pred_check
                _
              $region41: #{aladyn_forward.4} parent=27 // pred_check_branch
                %201 = sbr.rel (0) target = $region43
              $region42: #{aladyn_forward.4} parent=27 // pred_region
                loop: start=0, step=1, limit=1
                $region44: #{aladyn_forward.4} parent=42 // loop_pre_header
                  _
                $region45: #{aladyn_forward.4} parent=42 // loop_header
                  %s203 = sphi 0, %s207
                  %p204 = scmp.ge.s32.totalorder %s203, 1
                  %s208 = sphi %s168, %s168
                  %s209 = sphi %s163, %s163
                $region46: #{aladyn_forward.4} parent=42 // loop_header_branch
                  %206 = sbr.rel (%p204) target = $region50
                $region47: #{aladyn_forward.4} parent=42 // loop_body
                  _
                $region48: #{aladyn_forward.4} parent=42 // loop_footer
                  %s207 = sadd.s32 1, %s203
                $region49: #{aladyn_forward.4} parent=42 // loop_footer_branch
                  %202 = sbr.rel target = $region45
                $region50: #{aladyn_forward.4} parent=42 // loop_exit
                  _
                loop: start=0, step=1, limit=1
                $region51: #{aladyn_forward.4} parent=42 // loop_pre_header
                  _
                $region52: #{aladyn_forward.4} parent=42 // loop_header
                  %s212 = sphi 0, %s216
                  %p213 = scmp.ge.s32.totalorder %s212, 1
                  %s217 = sphi %s168, %s168
                  %s218 = sphi %s163, %s163
                $region53: #{aladyn_forward.4} parent=42 // loop_header_branch
                  %215 = sbr.rel (%p213) target = $region57
                $region54: #{aladyn_forward.4} parent=42 // loop_body
                  %v219 = vld [vmem:[%s217] sm:$0xf]
                  %220 = vst [vmem:[%s218] sm:$0xf] %v219
                  %v221 = vld [vmem:[%s217 + $0x8] sm:$0xf]
                  %222 = vst [vmem:[%s218 + $0x4] sm:$0xf] %v221
                  %v223 = vld [vmem:[%s217 + $0x10] sm:$0xf]
                  %224 = vst [vmem:[%s218 + $0x8] sm:$0xf] %v223
                  %v225 = vld [vmem:[%s217 + $0x18] sm:$0xf]
                  %226 = vst [vmem:[%s218 + $0xc] sm:$0xf] %v225
                  %v227 = vld [vmem:[%s217 + $0x20] sm:$0xf]
                  %228 = vst [vmem:[%s218 + $0x10] sm:$0xf] %v227
                  %v229 = vld [vmem:[%s217 + $0x28] sm:$0xf]
                  %230 = vst [vmem:[%s218 + $0x14] sm:$0xf] %v229
                  %v231 = vld [vmem:[%s217 + $0x30] sm:$0xf]
                  %232 = vst [vmem:[%s218 + $0x18] sm:$0xf] %v231
                  %v233 = vld [vmem:[%s217 + $0x38] sm:$0xf]
                  %234 = vst [vmem:[%s218 + $0x1c] sm:$0xf] %v233
                $region55: #{aladyn_forward.4} parent=42 // loop_footer
                  %s216 = sadd.s32 1, %s212
                $region56: #{aladyn_forward.4} parent=42 // loop_footer_branch
                  %211 = sbr.rel target = $region52
                $region57: #{aladyn_forward.4} parent=42 // loop_exit
                  _
              $region43: #{aladyn_forward.4} parent=27 // pred_fallthru
                _
            $region28: #{aladyn_forward.4} parent=23 // pred_fallthru
              _
            // Predicated region
            $region29: #{aladyn_forward.4} parent=23 // pred_check
              _
            $region30: #{aladyn_forward.4} parent=23 // pred_check_branch
              %174 = sbr.rel (0) target = $region32
            $region31: #{aladyn_forward.4} parent=23 // pred_region
              loop: start=0, step=1, limit=1
              $region33: #{aladyn_forward.4} parent=31 // loop_pre_header
                _
              $region34: #{aladyn_forward.4} parent=31 // loop_header
                %s177 = sphi 0, %s181
                %p178 = scmp.ge.s32.totalorder %s177, 1
                %s182 = sphi %s168, %s168
                %s183 = sphi %s163, %s163
              $region35: #{aladyn_forward.4} parent=31 // loop_header_branch
                %180 = sbr.rel (%p178) target = $region39
              $region36: #{aladyn_forward.4} parent=31 // loop_body
                %v184 = vld [vmem:[%s182] sm:$0xf]
                %185 = vst [vmem:[%s183] sm:$0xf] %v184
                %v186 = vld [vmem:[%s182 + $0x8] sm:$0xf]
                %187 = vst [vmem:[%s183 + $0x4] sm:$0xf] %v186
                %v188 = vld [vmem:[%s182 + $0x10] sm:$0xf]
                %189 = vst [vmem:[%s183 + $0x8] sm:$0xf] %v188
                %v190 = vld [vmem:[%s182 + $0x18] sm:$0xf]
                %191 = vst [vmem:[%s183 + $0xc] sm:$0xf] %v190
                %v192 = vld [vmem:[%s182 + $0x20] sm:$0xf]
                %193 = vst [vmem:[%s183 + $0x10] sm:$0xf] %v192
                %v194 = vld [vmem:[%s182 + $0x28] sm:$0xf]
                %195 = vst [vmem:[%s183 + $0x14] sm:$0xf] %v194
                %v196 = vld [vmem:[%s182 + $0x30] sm:$0xf]
                %197 = vst [vmem:[%s183 + $0x18] sm:$0xf] %v196
                %v198 = vld [vmem:[%s182 + $0x38] sm:$0xf]
                %199 = vst [vmem:[%s183 + $0x1c] sm:$0xf] %v198
              $region37: #{aladyn_forward.4} parent=31 // loop_footer
                %s181 = sadd.s32 1, %s177
              $region38: #{aladyn_forward.4} parent=31 // loop_footer_branch
                %176 = sbr.rel target = $region34
              $region39: #{aladyn_forward.4} parent=31 // loop_exit
                _
            $region32: #{aladyn_forward.4} parent=23 // pred_fallthru
              _
          $region24: #{aladyn_forward.4} parent=19 // pred_fallthru
            _
          %235 = vnop
        $region20: #{aladyn_forward.4} parent=15 // pred_fallthru
          _
        // Predicated region
        $region58: #{aladyn_forward.4} parent=15 // pred_check
          %p236 = pneg %p76
        $region59: #{aladyn_forward.4} parent=15 // pred_check_branch
          %238 = sbr.rel (%p236) target = $region61
        $region60: #{aladyn_forward.4} parent=15 // pred_region
          %s239 = sand.u32 %s66, 1
          %s240 = sand.u32 %s66, 1
          %s241 = smul.addr %s240, 64
          %s242 = scalar_lea.vmem [#allocation3], %s241
          %s243 = smul.addr %s23, 8
          %s244 = scalar_lea.vmem %s1, %s243
          // Predicated region
          $region62: #{aladyn_forward.4} parent=60 // pred_check
            _
          $region63: #{aladyn_forward.4} parent=60 // pred_check_branch
            %246 = sbr.rel (0) target = $region65
          $region64: #{aladyn_forward.4} parent=60 // pred_region
            // Predicated region
            $region66: #{aladyn_forward.4} parent=64 // pred_check
              _
            $region67: #{aladyn_forward.4} parent=64 // pred_check_branch
              %248 = sbr.rel (0) target = $region69
            $region68: #{aladyn_forward.4} parent=64 // pred_region
              // Predicated region
              $region81: #{aladyn_forward.4} parent=68 // pred_check
                _
              $region82: #{aladyn_forward.4} parent=68 // pred_check_branch
                %277 = sbr.rel (0) target = $region84
              $region83: #{aladyn_forward.4} parent=68 // pred_region
                loop: start=0, step=1, limit=1
                $region85: #{aladyn_forward.4} parent=83 // loop_pre_header
                  _
                $region86: #{aladyn_forward.4} parent=83 // loop_header
                  %s279 = sphi 0, %s283
                  %p280 = scmp.ge.s32.totalorder %s279, 1
                  %s284 = sphi %s244, %s244
                  %s285 = sphi %s242, %s242
                $region87: #{aladyn_forward.4} parent=83 // loop_header_branch
                  %282 = sbr.rel (%p280) target = $region91
                $region88: #{aladyn_forward.4} parent=83 // loop_body
                  %v286 = vld [vmem:[%s284] sm:$0xff]
                  %287 = vst [vmem:[%s285] sm:$0xff] %v286
                  %v288 = vld [vmem:[%s284 + $0x10] sm:$0xff]
                  %289 = vst [vmem:[%s285 + $0x8] sm:$0xff] %v288
                  %v290 = vld [vmem:[%s284 + $0x20] sm:$0xff]
                  %291 = vst [vmem:[%s285 + $0x10] sm:$0xff] %v290
                  %v292 = vld [vmem:[%s284 + $0x30] sm:$0xff]
                  %293 = vst [vmem:[%s285 + $0x18] sm:$0xff] %v292
                  %v294 = vld [vmem:[%s284 + $0x40] sm:$0xff]
                  %295 = vst [vmem:[%s285 + $0x20] sm:$0xff] %v294
                  %v296 = vld [vmem:[%s284 + $0x50] sm:$0xff]
                  %297 = vst [vmem:[%s285 + $0x28] sm:$0xff] %v296
                  %v298 = vld [vmem:[%s284 + $0x60] sm:$0xff]
                  %299 = vst [vmem:[%s285 + $0x30] sm:$0xff] %v298
                  %v300 = vld [vmem:[%s284 + $0x70] sm:$0xff]
                  %301 = vst [vmem:[%s285 + $0x38] sm:$0xff] %v300
                $region89: #{aladyn_forward.4} parent=83 // loop_footer
                  %s283 = sadd.s32 1, %s279
                $region90: #{aladyn_forward.4} parent=83 // loop_footer_branch
                  %278 = sbr.rel target = $region86
                $region91: #{aladyn_forward.4} parent=83 // loop_exit
                  _
              $region84: #{aladyn_forward.4} parent=68 // pred_fallthru
                _
              // Predicated region
              $region92: #{aladyn_forward.4} parent=68 // pred_check
                _
              $region93: #{aladyn_forward.4} parent=68 // pred_check_branch
                %303 = sbr.rel target = $region95
              $region94: #{aladyn_forward.4} parent=68 // pred_region
                _
              $region95: #{aladyn_forward.4} parent=68 // pred_fallthru
                _
            $region69: #{aladyn_forward.4} parent=64 // pred_fallthru
              _
            // Predicated region
            $region70: #{aladyn_forward.4} parent=64 // pred_check
              _
            $region71: #{aladyn_forward.4} parent=64 // pred_check_branch
              %250 = sbr.rel target = $region73
            $region72: #{aladyn_forward.4} parent=64 // pred_region
              loop: start=0, step=1, limit=1
              $region74: #{aladyn_forward.4} parent=72 // loop_pre_header
                _
              $region75: #{aladyn_forward.4} parent=72 // loop_header
                %s253 = sphi 0, %s257
                %p254 = scmp.ge.s32.totalorder %s253, 1
                %s258 = sphi %s244, %s244
                %s259 = sphi %s242, %s242
              $region76: #{aladyn_forward.4} parent=72 // loop_header_branch
                %256 = sbr.rel (%p254) target = $region80
              $region77: #{aladyn_forward.4} parent=72 // loop_body
                %v260 = vld [vmem:[%s258] sm:$0xff]
                %261 = vst [vmem:[%s259] sm:$0xff] %v260
                %v262 = vld [vmem:[%s258 + $0x10] sm:$0xff]
                %263 = vst [vmem:[%s259 + $0x8] sm:$0xff] %v262
                %v264 = vld [vmem:[%s258 + $0x20] sm:$0xff]
                %265 = vst [vmem:[%s259 + $0x10] sm:$0xff] %v264
                %v266 = vld [vmem:[%s258 + $0x30] sm:$0xff]
                %267 = vst [vmem:[%s259 + $0x18] sm:$0xff] %v266
                %v268 = vld [vmem:[%s258 + $0x40] sm:$0xff]
                %269 = vst [vmem:[%s259 + $0x20] sm:$0xff] %v268
                %v270 = vld [vmem:[%s258 + $0x50] sm:$0xff]
                %271 = vst [vmem:[%s259 + $0x28] sm:$0xff] %v270
                %v272 = vld [vmem:[%s258 + $0x60] sm:$0xff]
                %273 = vst [vmem:[%s259 + $0x30] sm:$0xff] %v272
                %v274 = vld [vmem:[%s258 + $0x70] sm:$0xff]
                %275 = vst [vmem:[%s259 + $0x38] sm:$0xff] %v274
              $region78: #{aladyn_forward.4} parent=72 // loop_footer
                %s257 = sadd.s32 1, %s253
              $region79: #{aladyn_forward.4} parent=72 // loop_footer_branch
                %252 = sbr.rel target = $region75
              $region80: #{aladyn_forward.4} parent=72 // loop_exit
                _
            $region73: #{aladyn_forward.4} parent=64 // pred_fallthru
              _
          $region65: #{aladyn_forward.4} parent=60 // pred_fallthru
            _
          %304 = vnop
        $region61: #{aladyn_forward.4} parent=15 // pred_fallthru
          _
      $region16: #{aladyn_forward.4} parent=5 // pred_fallthru
        _
      %p305 = scmp.le.s32.totalorder 1, %s16
      %p306 = scmp.lt.s32.totalorder %s16, 3
      %p307 = pnand %p305, %p306
      %p308 = pneg %p307
      // Predicated region
      $region96: #{aladyn_forward.4} parent=5 // pred_check
        _
      $region97: #{aladyn_forward.4} parent=5 // pred_check_branch
        %310 = sbr.rel (%p307) target = $region99
      $region98: #{aladyn_forward.4} parent=5 // pred_region
        %s311 = ssub.s32 %s16, 1
        %s312 = sand.u32 %s43, 1
        %s313 = sand.u32 %s43, 1
        %s314 = smul.addr %s313, 32
        %s315 = scalar_lea.vmem [#allocation2], %s314
        // Predicated region
        $region100: #{aladyn_forward.4} parent=98 // pred_check
          %p316 = pneg %p56
        $region101: #{aladyn_forward.4} parent=98 // pred_check_branch
          %318 = sbr.rel (%p316) target = $region103
        $region102: #{aladyn_forward.4} parent=98 // pred_region
          _
        $region103: #{aladyn_forward.4} parent=98 // pred_fallthru
          _
        %s319 = sand.u32 %s69, 1
        %s320 = sand.u32 %s69, 1
        %s321 = smul.addr %s320, 64
        %s322 = scalar_lea.vmem [#allocation3], %s321
        // Predicated region
        $region104: #{aladyn_forward.4} parent=98 // pred_check
          %p323 = pneg %p82
        $region105: #{aladyn_forward.4} parent=98 // pred_check_branch
          %325 = sbr.rel (%p323) target = $region107
        $region106: #{aladyn_forward.4} parent=98 // pred_region
          _
        $region107: #{aladyn_forward.4} parent=98 // pred_fallthru
          _
        %s326 = sand.u32 %s43, 1
        %s327 = sand.u32 %s43, 1
        %s328 = smul.addr %s327, 32
        %s329 = scalar_lea.vmem [#allocation2], %s328
        %p330 = pneg %p56
        %p331 = pneg %p53
        %s332 = sand.u32 %s69, 1
        %s333 = sand.u32 %s69, 1
        %s334 = smul.addr %s333, 64
        %s335 = scalar_lea.vmem [#allocation3], %s334
        %p336 = pneg %p82
        %p337 = pneg %p79
        %p338 = pneg %p110
        %p339 = pneg %p107
        %s340 = sand.u32 %s97, 1
        %s341 = scalar_lea.sflag [#allocation5], %s340
        %s342 = sand.u32 %s97, 1
        %s343 = smul.addr %s342, 128
        %s344 = scalar_lea.vmem [#allocation4], %s343
        %p345 = pneg %p138
        %p346 = pneg %p135
        %s347 = sand.u32 %s125, 1
        %s348 = scalar_lea.sflag [#allocation7], %s347
        %s349 = sand.u32 %s125, 1
        %s350 = smul.addr %s349, 32
        %s351 = scalar_lea.vmem [#allocation6], %s350
        %s352 = smul.u32 8, %s26
        %s353 = smul.u32 8, %s26
        %s354 = smul.u32 8, %s26
        %v355 = vld [vmem:[%s315] sm:$0xf]
        %v356 = vld [vmem:[%s315 + $0x4] sm:$0xf]
        %v357 = vld [vmem:[%s315 + $0x8] sm:$0xf]
        %v358 = vld [vmem:[%s315 + $0xc] sm:$0xf]
        %v359 = vld [vmem:[%s315 + $0x10] sm:$0xf]
        %v360 = vld [vmem:[%s315 + $0x14] sm:$0xf]
        %v361 = vld [vmem:[%s315 + $0x18] sm:$0xf]
        %v362 = vld [vmem:[%s315 + $0x1c] sm:$0xf]
        %vm363 = vcmask 1043456
        %v364 = vsel %vm363, %v355, -inf
        %v365 = vrot.slane %v364, 4
        %v366 = vmax.f32 %v364, %v365
        %v367 = vrot.slane %v366, 2
        %v368 = vmax.f32 %v366, %v367
        %v369 = vrot.slane %v368, 1
        %v370 = vmax.f32 %v368, %v369
        %v371 = vsel %vm363, %v356, -inf
        %v372 = vrot.slane %v371, 4
        %v373 = vmax.f32 %v371, %v372
        %v374 = vrot.slane %v373, 2
        %v375 = vmax.f32 %v373, %v374
        %v376 = vrot.slane %v375, 1
        %v377 = vmax.f32 %v375, %v376
        %v378 = vsel %vm363, %v357, -inf
        %v379 = vrot.slane %v378, 4
        %v380 = vmax.f32 %v378, %v379
        %v381 = vrot.slane %v380, 2
        %v382 = vmax.f32 %v380, %v381
        %v383 = vrot.slane %v382, 1
        %v384 = vmax.f32 %v382, %v383
        %v385 = vsel %vm363, %v358, -inf
        %v386 = vrot.slane %v385, 4
        %v387 = vmax.f32 %v385, %v386
        %v388 = vrot.slane %v387, 2
        %v389 = vmax.f32 %v387, %v388
        %v390 = vrot.slane %v389, 1
        %v391 = vmax.f32 %v389, %v390
        %v392 = vsel %vm363, %v359, -inf
        %v393 = vrot.slane %v392, 4
        %v394 = vmax.f32 %v392, %v393
        %v395 = vrot.slane %v394, 2
        %v396 = vmax.f32 %v394, %v395
        %v397 = vrot.slane %v396, 1
        %v398 = vmax.f32 %v396, %v397
        %v399 = vsel %vm363, %v360, -inf
        %v400 = vrot.slane %v399, 4
        %v401 = vmax.f32 %v399, %v400
        %v402 = vrot.slane %v401, 2
        %v403 = vmax.f32 %v401, %v402
        %v404 = vrot.slane %v403, 1
        %v405 = vmax.f32 %v403, %v404
        %v406 = vsel %vm363, %v361, -inf
        %v407 = vrot.slane %v406, 4
        %v408 = vmax.f32 %v406, %v407
        %v409 = vrot.slane %v408, 2
        %v410 = vmax.f32 %v408, %v409
        %v411 = vrot.slane %v410, 1
        %v412 = vmax.f32 %v410, %v411
        %v413 = vsel %vm363, %v362, -inf
        %v414 = vrot.slane %v413, 4
        %v415 = vmax.f32 %v413, %v414
        %v416 = vrot.slane %v415, 2
        %v417 = vmax.f32 %v415, %v416
        %v418 = vrot.slane %v417, 1
        %v419 = vmax.f32 %v417, %v418
        %v420 = vsub.f32 %v355, %v370
        %v421 = vsub.f32 %v356, %v377
        %v422 = vsub.f32 %v357, %v384
        %v423 = vsub.f32 %v358, %v391
        %v424 = vsub.f32 %v359, %v398
        %v425 = vsub.f32 %v360, %v405
        %v426 = vsub.f32 %v361, %v412
        %v427 = vsub.f32 %v362, %v419
        %v428 = vmul.f32 %v420, 1.442695
        %v429 = vpow.pop %v428
        %v430 = vmul.f32 %v421, 1.442695
        %v431 = vpow.pop %v430
        %v432 = vmul.f32 %v422, 1.442695
        %v433 = vpow.pop %v432
        %v434 = vmul.f32 %v423, 1.442695
        %v435 = vpow.pop %v434
        %v436 = vmul.f32 %v424, 1.442695
        %v437 = vpow.pop %v436
        %v438 = vmul.f32 %v425, 1.442695
        %v439 = vpow.pop %v438
        %v440 = vmul.f32 %v426, 1.442695
        %v441 = vpow.pop %v440
        %v442 = vmul.f32 %v427, 1.442695
        %v443 = vpow.pop %v442
        %v444 = vsel %vm363, %v429, 0.0
        %v445 = vrot.slane %v444, 4
        %v446 = vadd.f32 %v444, %v445
        %v447 = vrot.slane %v446, 2
        %v448 = vadd.f32 %v446, %v447
        %v449 = vrot.slane %v448, 1
        %v450 = vadd.f32 %v448, %v449
        %v451 = vsel %vm363, %v431, 0.0
        %v452 = vrot.slane %v451, 4
        %v453 = vadd.f32 %v451, %v452
        %v454 = vrot.slane %v453, 2
        %v455 = vadd.f32 %v453, %v454
        %v456 = vrot.slane %v455, 1
        %v457 = vadd.f32 %v455, %v456
        %v458 = vsel %vm363, %v433, 0.0
        %v459 = vrot.slane %v458, 4
        %v460 = vadd.f32 %v458, %v459
        %v461 = vrot.slane %v460, 2
        %v462 = vadd.f32 %v460, %v461
        %v463 = vrot.slane %v462, 1
        %v464 = vadd.f32 %v462, %v463
        %v465 = vsel %vm363, %v435, 0.0
        %v466 = vrot.slane %v465, 4
        %v467 = vadd.f32 %v465, %v466
        %v468 = vrot.slane %v467, 2
        %v469 = vadd.f32 %v467, %v468
        %v470 = vrot.slane %v469, 1
        %v471 = vadd.f32 %v469, %v470
        %v472 = vsel %vm363, %v437, 0.0
        %v473 = vrot.slane %v472, 4
        %v474 = vadd.f32 %v472, %v473
        %v475 = vrot.slane %v474, 2
        %v476 = vadd.f32 %v474, %v475
        %v477 = vrot.slane %v476, 1
        %v478 = vadd.f32 %v476, %v477
        %v479 = vsel %vm363, %v439, 0.0
        %v480 = vrot.slane %v479, 4
        %v481 = vadd.f32 %v479, %v480
        %v482 = vrot.slane %v481, 2
        %v483 = vadd.f32 %v481, %v482
        %v484 = vrot.slane %v483, 1
        %v485 = vadd.f32 %v483, %v484
        %v486 = vsel %vm363, %v441, 0.0
        %v487 = vrot.slane %v486, 4
        %v488 = vadd.f32 %v486, %v487
        %v489 = vrot.slane %v488, 2
        %v490 = vadd.f32 %v488, %v489
        %v491 = vrot.slane %v490, 1
        %v492 = vadd.f32 %v490, %v491
        %v493 = vsel %vm363, %v443, 0.0
        %v494 = vrot.slane %v493, 4
        %v495 = vadd.f32 %v493, %v494
        %v496 = vrot.slane %v495, 2
        %v497 = vadd.f32 %v495, %v496
        %v498 = vrot.slane %v497, 1
        %v499 = vadd.f32 %v497, %v498
        %v500 = vrcp.pop %v450
        %v501 = vrcp.pop %v457
        %v502 = vrcp.pop %v464
        %v503 = vrcp.pop %v471
        %v504 = vrcp.pop %v478
        %v505 = vrcp.pop %v485
        %v506 = vrcp.pop %v492
        %v507 = vrcp.pop %v499
        %v508 = vmul.f32 %v429, %v500
        %v509 = vmul.f32 %v431, %v501
        %v510 = vmul.f32 %v433, %v502
        %v511 = vmul.f32 %v435, %v503
        %v512 = vmul.f32 %v437, %v504
        %v513 = vmul.f32 %v439, %v505
        %v514 = vmul.f32 %v441, %v506
        %v515 = vmul.f32 %v443, %v507
        %516 = vst [vmem:[%s351] sm:$0xf] %v508
        %517 = vst [vmem:[%s351 + $0x4] sm:$0xf] %v509
        %518 = vst [vmem:[%s351 + $0x8] sm:$0xf] %v510
        %519 = vst [vmem:[%s351 + $0xc] sm:$0xf] %v511
        %520 = vst [vmem:[%s351 + $0x10] sm:$0xf] %v512
        %521 = vst [vmem:[%s351 + $0x14] sm:$0xf] %v513
        %522 = vst [vmem:[%s351 + $0x18] sm:$0xf] %v514
        %523 = vst [vmem:[%s351 + $0x1c] sm:$0xf] %v515
        %v524 = vld [vmem:[%s322] sm:$0xff]
        %v525 = vld [vmem:[%s322 + $0x8] sm:$0xff]
        %v526 = vld [vmem:[%s322 + $0x10] sm:$0xff]
        %v527 = vld [vmem:[%s322 + $0x18] sm:$0xff]
        %v528 = vld [vmem:[%s322 + $0x20] sm:$0xff]
        %v529 = vld [vmem:[%s322 + $0x28] sm:$0xff]
        %v530 = vld [vmem:[%s322 + $0x30] sm:$0xff]
        %v531 = vld [vmem:[%s322 + $0x38] sm:$0xff]
        %v532 = vlaneseq
        %v533 = vshrl.u32 %v532, 7
        %v534 = vsub.s32 0, %v533
        %v535 = vrot.slane %v508, %v534
        %v536 = vlaneseq
        %v537 = vshrl.u32 %v536, 7
        %v538 = vsub.s32 0, %v537
        %v539 = vrot.slane %v509, %v538
        %v540 = vlaneseq
        %v541 = vshrl.u32 %v540, 7
        %v542 = vsub.s32 0, %v541
        %v543 = vrot.slane %v510, %v542
        %v544 = vlaneseq
        %v545 = vshrl.u32 %v544, 7
        %v546 = vsub.s32 0, %v545
        %v547 = vrot.slane %v511, %v546
        %v548 = vlaneseq
        %v549 = vshrl.u32 %v548, 7
        %v550 = vsub.s32 0, %v549
        %v551 = vrot.slane %v512, %v550
        %v552 = vlaneseq
        %v553 = vshrl.u32 %v552, 7
        %v554 = vsub.s32 0, %v553
        %v555 = vrot.slane %v513, %v554
        %v556 = vlaneseq
        %v557 = vshrl.u32 %v556, 7
        %v558 = vsub.s32 0, %v557
        %v559 = vrot.slane %v514, %v558
        %v560 = vlaneseq
        %v561 = vshrl.u32 %v560, 7
        %v562 = vsub.s32 0, %v561
        %v563 = vrot.slane %v515, %v562
        %v564 = vmul.f32 %v535, %v524
        %v565 = vmul.f32 %v535, %v525
        %v566 = vmul.f32 %v539, %v524
        %v567 = vmul.f32 %v539, %v525
        %v568 = vmul.f32 %v543, %v524
        %v569 = vmul.f32 %v543, %v525
        %v570 = vmul.f32 %v547, %v524
        %v571 = vmul.f32 %v547, %v525
        %v572 = vmul.f32 %v551, %v524
        %v573 = vmul.f32 %v551, %v525
        %v574 = vmul.f32 %v555, %v524
        %v575 = vmul.f32 %v555, %v525
        %v576 = vmul.f32 %v559, %v524
        %v577 = vmul.f32 %v559, %v525
        %v578 = vmul.f32 %v563, %v524
        %v579 = vmul.f32 %v563, %v525
        %v580 = vlaneseq
        %v581 = vshrl.u32 %v580, 7
        %v582 = vsub.s32 1, %v581
        %v583 = vrot.slane %v508, %v582
        %v584 = vlaneseq
        %v585 = vshrl.u32 %v584, 7
        %v586 = vsub.s32 1, %v585
        %v587 = vrot.slane %v509, %v586
        %v588 = vlaneseq
        %v589 = vshrl.u32 %v588, 7
        %v590 = vsub.s32 1, %v589
        %v591 = vrot.slane %v510, %v590
        %v592 = vlaneseq
        %v593 = vshrl.u32 %v592, 7
        %v594 = vsub.s32 1, %v593
        %v595 = vrot.slane %v511, %v594
        %v596 = vlaneseq
        %v597 = vshrl.u32 %v596, 7
        %v598 = vsub.s32 1, %v597
        %v599 = vrot.slane %v512, %v598
        %v600 = vlaneseq
        %v601 = vshrl.u32 %v600, 7
        %v602 = vsub.s32 1, %v601
        %v603 = vrot.slane %v513, %v602
        %v604 = vlaneseq
        %v605 = vshrl.u32 %v604, 7
        %v606 = vsub.s32 1, %v605
        %v607 = vrot.slane %v514, %v606
        %v608 = vlaneseq
        %v609 = vshrl.u32 %v608, 7
        %v610 = vsub.s32 1, %v609
        %v611 = vrot.slane %v515, %v610
        %v612 = vmul.f32 %v583, %v526
        %v613 = vmul.f32 %v583, %v527
        %v614 = vmul.f32 %v587, %v526
        %v615 = vmul.f32 %v587, %v527
        %v616 = vmul.f32 %v591, %v526
        %v617 = vmul.f32 %v591, %v527
        %v618 = vmul.f32 %v595, %v526
        %v619 = vmul.f32 %v595, %v527
        %v620 = vmul.f32 %v599, %v526
        %v621 = vmul.f32 %v599, %v527
        %v622 = vmul.f32 %v603, %v526
        %v623 = vmul.f32 %v603, %v527
        %v624 = vmul.f32 %v607, %v526
        %v625 = vmul.f32 %v607, %v527
        %v626 = vmul.f32 %v611, %v526
        %v627 = vmul.f32 %v611, %v527
        %v628 = vadd.f32 %v564, %v612
        %v629 = vadd.f32 %v565, %v613
        %v630 = vadd.f32 %v566, %v614
        %v631 = vadd.f32 %v567, %v615
        %v632 = vadd.f32 %v568, %v616
        %v633 = vadd.f32 %v569, %v617
        %v634 = vadd.f32 %v570, %v618
        %v635 = vadd.f32 %v571, %v619
        %v636 = vadd.f32 %v572, %v620
        %v637 = vadd.f32 %v573, %v621
        %v638 = vadd.f32 %v574, %v622
        %v639 = vadd.f32 %v575, %v623
        %v640 = vadd.f32 %v576, %v624
        %v641 = vadd.f32 %v577, %v625
        %v642 = vadd.f32 %v578, %v626
        %v643 = vadd.f32 %v579, %v627
        %v644 = vlaneseq
        %v645 = vshrl.u32 %v644, 7
        %v646 = vsub.s32 2, %v645
        %v647 = vrot.slane %v508, %v646
        %v648 = vlaneseq
        %v649 = vshrl.u32 %v648, 7
        %v650 = vsub.s32 2, %v649
        %v651 = vrot.slane %v509, %v650
        %v652 = vlaneseq
        %v653 = vshrl.u32 %v652, 7
        %v654 = vsub.s32 2, %v653
        %v655 = vrot.slane %v510, %v654
        %v656 = vlaneseq
        %v657 = vshrl.u32 %v656, 7
        %v658 = vsub.s32 2, %v657
        %v659 = vrot.slane %v511, %v658
        %v660 = vlaneseq
        %v661 = vshrl.u32 %v660, 7
        %v662 = vsub.s32 2, %v661
        %v663 = vrot.slane %v512, %v662
        %v664 = vlaneseq
        %v665 = vshrl.u32 %v664, 7
        %v666 = vsub.s32 2, %v665
        %v667 = vrot.slane %v513, %v666
        %v668 = vlaneseq
        %v669 = vshrl.u32 %v668, 7
        %v670 = vsub.s32 2, %v669
        %v671 = vrot.slane %v514, %v670
        %v672 = vlaneseq
        %v673 = vshrl.u32 %v672, 7
        %v674 = vsub.s32 2, %v673
        %v675 = vrot.slane %v515, %v674
        %v676 = vmul.f32 %v647, %v528
        %v677 = vmul.f32 %v647, %v529
        %v678 = vmul.f32 %v651, %v528
        %v679 = vmul.f32 %v651, %v529
        %v680 = vmul.f32 %v655, %v528
        %v681 = vmul.f32 %v655, %v529
        %v682 = vmul.f32 %v659, %v528
        %v683 = vmul.f32 %v659, %v529
        %v684 = vmul.f32 %v663, %v528
        %v685 = vmul.f32 %v663, %v529
        %v686 = vmul.f32 %v667, %v528
        %v687 = vmul.f32 %v667, %v529
        %v688 = vmul.f32 %v671, %v528
        %v689 = vmul.f32 %v671, %v529
        %v690 = vmul.f32 %v675, %v528
        %v691 = vmul.f32 %v675, %v529
        %v692 = vadd.f32 %v628, %v676
        %v693 = vadd.f32 %v629, %v677
        %v694 = vadd.f32 %v630, %v678
        %v695 = vadd.f32 %v631, %v679
        %v696 = vadd.f32 %v632, %v680
        %v697 = vadd.f32 %v633, %v681
        %v698 = vadd.f32 %v634, %v682
        %v699 = vadd.f32 %v635, %v683
        %v700 = vadd.f32 %v636, %v684
        %v701 = vadd.f32 %v637, %v685
        %v702 = vadd.f32 %v638, %v686
        %v703 = vadd.f32 %v639, %v687
        %v704 = vadd.f32 %v640, %v688
        %v705 = vadd.f32 %v641, %v689
        %v706 = vadd.f32 %v642, %v690
        %v707 = vadd.f32 %v643, %v691
        %v708 = vlaneseq
        %v709 = vshrl.u32 %v708, 7
        %v710 = vsub.s32 3, %v709
        %v711 = vrot.slane %v508, %v710
        %v712 = vlaneseq
        %v713 = vshrl.u32 %v712, 7
        %v714 = vsub.s32 3, %v713
        %v715 = vrot.slane %v509, %v714
        %v716 = vlaneseq
        %v717 = vshrl.u32 %v716, 7
        %v718 = vsub.s32 3, %v717
        %v719 = vrot.slane %v510, %v718
        %v720 = vlaneseq
        %v721 = vshrl.u32 %v720, 7
        %v722 = vsub.s32 3, %v721
        %v723 = vrot.slane %v511, %v722
        %v724 = vlaneseq
        %v725 = vshrl.u32 %v724, 7
        %v726 = vsub.s32 3, %v725
        %v727 = vrot.slane %v512, %v726
        %v728 = vlaneseq
        %v729 = vshrl.u32 %v728, 7
        %v730 = vsub.s32 3, %v729
        %v731 = vrot.slane %v513, %v730
        %v732 = vlaneseq
        %v733 = vshrl.u32 %v732, 7
        %v734 = vsub.s32 3, %v733
        %v735 = vrot.slane %v514, %v734
        %v736 = vlaneseq
        %v737 = vshrl.u32 %v736, 7
        %v738 = vsub.s32 3, %v737
        %v739 = vrot.slane %v515, %v738
        %v740 = vmul.f32 %v711, %v530
        %v741 = vmul.f32 %v711, %v531
        %v742 = vmul.f32 %v715, %v530
        %v743 = vmul.f32 %v715, %v531
        %v744 = vmul.f32 %v719, %v530
        %v745 = vmul.f32 %v719, %v531
        %v746 = vmul.f32 %v723, %v530
        %v747 = vmul.f32 %v723, %v531
        %v748 = vmul.f32 %v727, %v530
        %v749 = vmul.f32 %v727, %v531
        %v750 = vmul.f32 %v731, %v530
        %v751 = vmul.f32 %v731, %v531
        %v752 = vmul.f32 %v735, %v530
        %v753 = vmul.f32 %v735, %v531
        %v754 = vmul.f32 %v739, %v530
        %v755 = vmul.f32 %v739, %v531
        %v756 = vadd.f32 %v692, %v740
        %v757 = vadd.f32 %v693, %v741
        %v758 = vadd.f32 %v694, %v742
        %v759 = vadd.f32 %v695, %v743
        %v760 = vadd.f32 %v696, %v744
        %v761 = vadd.f32 %v697, %v745
        %v762 = vadd.f32 %v698, %v746
        %v763 = vadd.f32 %v699, %v747
        %v764 = vadd.f32 %v700, %v748
        %v765 = vadd.f32 %v701, %v749
        %v766 = vadd.f32 %v702, %v750
        %v767 = vadd.f32 %v703, %v751
        %v768 = vadd.f32 %v704, %v752
        %v769 = vadd.f32 %v705, %v753
        %v770 = vadd.f32 %v706, %v754
        %v771 = vadd.f32 %v707, %v755
        %772 = vst [vmem:[%s344] sm:$0xff] %v756
        %773 = vst [vmem:[%s344 + $0x8] sm:$0xff] %v757
        %774 = vst [vmem:[%s344 + $0x10] sm:$0xff] %v758
        %775 = vst [vmem:[%s344 + $0x18] sm:$0xff] %v759
        %776 = vst [vmem:[%s344 + $0x20] sm:$0xff] %v760
        %777 = vst [vmem:[%s344 + $0x28] sm:$0xff] %v761
        %778 = vst [vmem:[%s344 + $0x30] sm:$0xff] %v762
        %779 = vst [vmem:[%s344 + $0x38] sm:$0xff] %v763
        %780 = vst [vmem:[%s344 + $0x40] sm:$0xff] %v764
        %781 = vst [vmem:[%s344 + $0x48] sm:$0xff] %v765
        %782 = vst [vmem:[%s344 + $0x50] sm:$0xff] %v766
        %783 = vst [vmem:[%s344 + $0x58] sm:$0xff] %v767
        %784 = vst [vmem:[%s344 + $0x60] sm:$0xff] %v768
        %785 = vst [vmem:[%s344 + $0x68] sm:$0xff] %v769
        %786 = vst [vmem:[%s344 + $0x70] sm:$0xff] %v770
        %787 = vst [vmem:[%s344 + $0x78] sm:$0xff] %v771
        %s788 = sand.u32 %s97, 1
        %s789 = scalar_lea.sflag [#allocation5], %s788
        %s790 = sand.u32 %s97, 1
        %s791 = smul.addr %s790, 128
        %s792 = scalar_lea.vmem [#allocation4], %s791
        %s793 = sand.u32 %s125, 1
        %s794 = scalar_lea.sflag [#allocation7], %s793
        %s795 = sand.u32 %s125, 1
        %s796 = smul.addr %s795, 32
        %s797 = scalar_lea.vmem [#allocation6], %s796
        // Predicated region
        $region108: #{aladyn_forward.4} parent=98 // pred_check
          %p798 = pneg %p107
        $region109: #{aladyn_forward.4} parent=98 // pred_check_branch
          %800 = sbr.rel (%p798) target = $region111
        $region110: #{aladyn_forward.4} parent=98 // pred_region
          %s801 = smul.u32 8, %s26
          %s803 = ssub.s32 2048, 2048
          %804 = vsyncadd %s789, %s803
          %s805 = smul.addr %s801, 4
          %s806 = sadd.s32 %s25, %s805
          %s807 = smul.addr %s806, 128
          %s808 = scalar_lea.hbm %s2, %s807
          %s809 = sshll.u32 %s792, 4
          %s810 = int_to_ptr.vmem [resolvable:$true] %s809
          %815 = dma.vmem_to_hbm [thread:$0]  %s810, 2048, %s808, %s789, 128, 256, 8
        $region111: #{aladyn_forward.4} parent=98 // pred_fallthru
          _
        // Predicated region
        $region112: #{aladyn_forward.4} parent=98 // pred_check
          %p816 = pneg %p135
        $region113: #{aladyn_forward.4} parent=98 // pred_check_branch
          %818 = sbr.rel (%p816) target = $region115
        $region114: #{aladyn_forward.4} parent=98 // pred_region
          %s819 = smul.u32 8, %s26
          %s821 = ssub.s32 512, 512
          %822 = vsyncadd %s794, %s821
          %s823 = smul.addr %s819, 2
          %s824 = sadd.s32 %s25, %s823
          %s825 = smul.addr %s824, 64
          %s826 = scalar_lea.hbm %s3, %s825
          %s827 = sshll.u32 %s797, 4
          %s828 = int_to_ptr.vmem [resolvable:$true] %s827
          %833 = dma.vmem_to_hbm [thread:$0]  %s828, 512, %s826, %s794, 64, 128, 4
        $region115: #{aladyn_forward.4} parent=98 // pred_fallthru
          _
      $region99: #{aladyn_forward.4} parent=5 // pred_fallthru
        _
      %p834 = scmp.le.s32.totalorder 2, %s16
      // Predicated region
      $region116: #{aladyn_forward.4} parent=5 // pred_check
        %p835 = pneg %p834
      $region117: #{aladyn_forward.4} parent=5 // pred_check_branch
        %837 = sbr.rel (%p835) target = $region119
      $region118: #{aladyn_forward.4} parent=5 // pred_region
        %s838 = ssub.s32 %s16, 2
        // Predicated region
        $region120: #{aladyn_forward.4} parent=118 // pred_check
          %p839 = pneg %p113
        $region121: #{aladyn_forward.4} parent=118 // pred_check_branch
          %841 = sbr.rel (%p839) target = $region123
        $region122: #{aladyn_forward.4} parent=118 // pred_region
          %s842 = sand.u32 %s98, 1
          %s843 = scalar_lea.sflag [#allocation5], %s842
          %s844 = sand.u32 %s98, 1
          %s845 = smul.addr %s844, 128
          %s846 = scalar_lea.vmem [#allocation4], %s845
          %847 = dma.done %s843, 2048
        $region123: #{aladyn_forward.4} parent=118 // pred_fallthru
          _
        // Predicated region
        $region124: #{aladyn_forward.4} parent=118 // pred_check
          %p848 = pneg %p141
        $region125: #{aladyn_forward.4} parent=118 // pred_check_branch
          %850 = sbr.rel (%p848) target = $region127
        $region126: #{aladyn_forward.4} parent=118 // pred_region
          %s851 = sand.u32 %s126, 1
          %s852 = scalar_lea.sflag [#allocation7], %s851
          %s853 = sand.u32 %s126, 1
          %s854 = smul.addr %s853, 32
          %s855 = scalar_lea.vmem [#allocation6], %s854
          %856 = dma.done %s852, 512
        $region127: #{aladyn_forward.4} parent=118 // pred_fallthru
          _
      $region119: #{aladyn_forward.4} parent=5 // pred_fallthru
        _
    $region6: #{aladyn_forward.4} parent=1 // loop_footer
      %s20 = sadd.s32 1, %s16
    $region7: #{aladyn_forward.4} parent=1 // loop_footer_branch
      %15 = sbr.rel target = $region3
    $region8: #{aladyn_forward.4} parent=1 // loop_exit
      _
    %857 = vsyncpa [#allocation5], 1
    %s858 = scalar_lea.sflag [#allocation5], 1
    %859 = vsyncpa %s858, 1
    %860 = vsyncpa [#allocation7], 1
    %s861 = scalar_lea.sflag [#allocation7], 1
    %862 = vsyncpa %s861, 1

// kernel: aladyn_forward.5
$region0: #{aladyn_forward.5}
  #allocation0 [shape = 'u32[]', space=smem, size = 0x4, offset = 0x4, fixed_abs, tag = 'smem constant byte address 0x4 - core index']
  #allocation1 [shape = 'u32[144,128]{1,0:T(1,128)}', space=vmem, size = 0x12000, scoped, tag = 'internal scratch']
  %s0 = inlined_call_operand.vmem [shape: f32[4], index: 0, kind: input, shape index: {}]
  %s1 = inlined_call_operand.vmem [shape: f32[4], index: 1, kind: input, shape index: {}]
  %s2 = inlined_call_operand.vmem [shape: f32[4,256,256], index: 2, kind: output, shape index: {}]
  %s3 = sld [smem:[#allocation0]]
  $region53: #{aladyn_forward.5} parent=0
    _
  %s5 = ssub.s32 1, %s3
  %s6 = scalar_select 0, %s5, %s3
  $region1: #{aladyn_forward.5} parent=0
    #allocation2 [shape = 'u8[512]{0}', space=smem, size = 0x200, scoped, tag = 'input window, operand 0, single buffered']
    #allocation3 [shape = 's32[2]{0}', space=sflag, size = 0x8, scoped, tag = 'scoped memory for aladyn_forward.5']
    #allocation4 [shape = 'u8[512]{0}', space=smem, size = 0x200, scoped, tag = 'input window, operand 1, single buffered']
    #allocation5 [shape = 's32[1]{0}', space=sflag, size = 0x4, scoped, tag = 'scoped memory for aladyn_forward.5']
    %7 = vsyncpa [#allocation3], 0
    %8 = vsyncpa [#allocation5], 0
    loop: start=0, step=1, limit=6
    $region2: #{aladyn_forward.5} parent=1 // loop_pre_header
      _
    $region3: #{aladyn_forward.5} parent=1 // loop_header
      %s10 = sphi 0, %s14
      %p11 = scmp.ge.s32.totalorder %s10, 6
      %s17 = sphi 0, %s36
      %s18 = sphi 0, %s32
      %s19 = sphi 0, %s28
      %s20 = sphi 0, %s17
      %s21 = sphi 0, %s18
      %s22 = sphi 0, %s19
      %s23 = sphi 0, %s20
      %s24 = sphi 0, %s21
      %s25 = sphi 0, %s22
      %s37 = sphi 0, %s37
      %s39 = sphi 0, %s37
      %s40 = sphi 0, %s39
      %s54 = sphi 0, %s40
      %s58 = sphi 0, %s58
      %s60 = sphi 0, %s58
      %s61 = sphi 0, %s60
      %s75 = sphi 0, %s61
      %s85 = sphi 0, %s87
      %s88 = sphi 0, %s85
      %s89 = sphi 0, %s88
      %s105 = sphi 0, %s89
    $region4: #{aladyn_forward.5} parent=1 // loop_header_branch
      %13 = sbr.rel (%p11) target = $region8
    $region5: #{aladyn_forward.5} parent=1 // loop_body
      %s15 = ssub.s32 %s10, 1
      %s16 = ssub.s32 %s10, 2
      %s26 = sadd.s32 1, %s19
      %p27 = scmp.ge.s32.totalorder %s26, 1
      %s28 = scalar_select %p27, 0, %s26
      %s29 = sadd.s32 1, %s18
      %s30 = scalar_select %p27, %s29, %s18
      %p31 = scmp.ge.s32.totalorder %s30, 1
      %s32 = scalar_select %p31, 0, %s30
      %s33 = sadd.s32 1, %s17
      %s34 = scalar_select %p31, %s33, %s17
      %p35 = scmp.ge.s32.totalorder %s34, 4
      %s36 = scalar_select %p35, 0, %s34
      %s38 = sadd.s32 %s37, 1
      %p41 = scmp.eq.s32.totalorder %s10, 3
      %p42 = scmp.ne.s32.totalorder %s37, %s39
      %p43 = scmp.eq.s32.totalorder %s10, 0
      %p44 = por %p42, %p43
      %p45 = scmp.ne.s32.totalorder %s37, %s39
      %p46 = scmp.eq.s32.totalorder %s15, 3
      %p47 = por %p45, %p46
      %p48 = scmp.ne.s32.totalorder %s39, %s40
      %p49 = scmp.eq.s32.totalorder %s15, 0
      %p50 = por %p48, %p49
      %p51 = scmp.ne.s32.totalorder %s39, %s40
      %p52 = scmp.eq.s32.totalorder %s16, 3
      %p53 = por %p51, %p52
      %p55 = scmp.ne.s32.totalorder %s40, %s54
      %p56 = scmp.eq.s32.totalorder %s16, 0
      %p57 = por %p55, %p56
      %s59 = sadd.s32 %s58, 1
      %p62 = scmp.eq.s32.totalorder %s10, 3
      %p63 = scmp.ne.s32.totalorder %s58, %s60
      %p64 = scmp.eq.s32.totalorder %s10, 0
      %p65 = por %p63, %p64
      %p66 = scmp.ne.s32.totalorder %s58, %s60
      %p67 = scmp.eq.s32.totalorder %s15, 3
      %p68 = por %p66, %p67
      %p69 = scmp.ne.s32.totalorder %s60, %s61
      %p70 = scmp.eq.s32.totalorder %s15, 0
      %p71 = por %p69, %p70
      %p72 = scmp.ne.s32.totalorder %s60, %s61
      %p73 = scmp.eq.s32.totalorder %s16, 3
      %p74 = por %p72, %p73
      %p76 = scmp.ne.s32.totalorder %s61, %s75
      %p77 = scmp.eq.s32.totalorder %s16, 0
      %p78 = por %p76, %p77
      %s79 = ssub.s32 %s17, %s36
      %s80 = ssub.s32 %s18, %s32
      %s81 = sor.u32 %s79, %s80
      %s82 = ssub.s32 %s19, %s28
      %s83 = sor.u32 %s81, %s82
      %p84 = scmp.eq.s32.totalorder %s83, 0
      %s86 = sadd.s32 %s85, 1
      %s87 = scalar_select %p84, %s85, %s86
      %p90 = pneg %p84
      %p91 = scmp.eq.s32.totalorder %s10, 3
      %p92 = por %p90, %p91
      %p93 = scmp.ne.s32.totalorder %s85, %s88
      %p94 = scmp.eq.s32.totalorder %s10, 0
      %p95 = por %p93, %p94
      %p96 = scmp.ne.s32.totalorder %s85, %s88
      %p97 = scmp.eq.s32.totalorder %s15, 3
      %p98 = por %p96, %p97
      %p99 = scmp.ne.s32.totalorder %s88, %s89
      %p100 = scmp.eq.s32.totalorder %s15, 0
      %p101 = por %p99, %p100
      %p102 = scmp.ne.s32.totalorder %s88, %s89
      %p103 = scmp.eq.s32.totalorder %s16, 3
      %p104 = por %p102, %p103
      %p106 = scmp.ne.s32.totalorder %s89, %s105
      %p107 = scmp.eq.s32.totalorder %s16, 0
      %p108 = por %p106, %p107
      %p109 = scmp.le.s32.totalorder 1, %s10
      %p110 = scmp.lt.s32.totalorder %s10, 5
      %p111 = pnand %p109, %p110
      %p112 = pneg %p111
      // Predicated region
      $region9: #{aladyn_forward.5} parent=5 // pred_check
        _
      $region10: #{aladyn_forward.5} parent=5 // pred_check_branch
        %114 = sbr.rel (%p111) target = $region12
      $region11: #{aladyn_forward.5} parent=5 // pred_region
        %s115 = ssub.s32 %s10, 1
        // Predicated region
        $region13: #{aladyn_forward.5} parent=11 // pred_check
          %p116 = pneg %p50
        $region14: #{aladyn_forward.5} parent=11 // pred_check_branch
          %118 = sbr.rel (%p116) target = $region16
        $region15: #{aladyn_forward.5} parent=11 // pred_region
          %s120 = ssub.s32 16, 16
          %121 = vsyncadd [#allocation3], %s120
          %s123 = sshll.u32 %s0, 4
          %s124 = int_to_ptr.vmem [resolvable:$true] %s123
          %126 = dma.vmem_to_smem %s124, 16, [#allocation2], [#allocation3]
        $region16: #{aladyn_forward.5} parent=11 // pred_fallthru
          _
        // Predicated region
        $region17: #{aladyn_forward.5} parent=11 // pred_check
          %p127 = pneg %p71
        $region18: #{aladyn_forward.5} parent=11 // pred_check_branch
          %129 = sbr.rel (%p127) target = $region20
        $region19: #{aladyn_forward.5} parent=11 // pred_region
          %s131 = ssub.s32 16, 16
          %132 = vsyncadd [#allocation5], %s131
          %s134 = sshll.u32 %s1, 4
          %s135 = int_to_ptr.vmem [resolvable:$true] %s134
          %137 = dma.vmem_to_smem %s135, 16, [#allocation4], [#allocation5]
        $region20: #{aladyn_forward.5} parent=11 // pred_fallthru
          _
      $region12: #{aladyn_forward.5} parent=5 // pred_fallthru
        _
      %p138 = scmp.lt.s32.totalorder %s10, 4
      // Predicated region
      $region21: #{aladyn_forward.5} parent=5 // pred_check
        %p139 = pneg %p138
      $region22: #{aladyn_forward.5} parent=5 // pred_check_branch
        %141 = sbr.rel (%p139) target = $region24
      $region23: #{aladyn_forward.5} parent=5 // pred_region
        _
      $region24: #{aladyn_forward.5} parent=5 // pred_fallthru
        _
      %p142 = scmp.le.s32.totalorder 1, %s10
      %p143 = scmp.lt.s32.totalorder %s10, 5
      %p144 = pnand %p142, %p143
      %p145 = pneg %p144
      // Predicated region
      $region25: #{aladyn_forward.5} parent=5 // pred_check
        _
      $region26: #{aladyn_forward.5} parent=5 // pred_check_branch
        %147 = sbr.rel (%p144) target = $region28
      $region27: #{aladyn_forward.5} parent=5 // pred_region
        %s148 = ssub.s32 %s10, 1
        // Predicated region
        $region29: #{aladyn_forward.5} parent=27 // pred_check
          %p149 = pneg %p50
        $region30: #{aladyn_forward.5} parent=27 // pred_check_branch
          %151 = sbr.rel (%p149) target = $region32
        $region31: #{aladyn_forward.5} parent=27 // pred_region
          %152 = dma.done [#allocation3], 16
        $region32: #{aladyn_forward.5} parent=27 // pred_fallthru
          _
        // Predicated region
        $region33: #{aladyn_forward.5} parent=27 // pred_check
          %p153 = pneg %p71
        $region34: #{aladyn_forward.5} parent=27 // pred_check_branch
          %155 = sbr.rel (%p153) target = $region36
        $region35: #{aladyn_forward.5} parent=27 // pred_region
          %156 = dma.done [#allocation5], 16
        $region36: #{aladyn_forward.5} parent=27 // pred_fallthru
          _
        %157 = sfence
        %p158 = pneg %p50
        %p159 = pneg %p47
        %p160 = pneg %p71
        %p161 = pneg %p68
        %p162 = pneg %p101
        %p163 = pneg %p98
        %s164 = smul.u32 32, %s21
        %s165 = smul.u32 2, %s22
        %p166 = scmp.lt.s32.totalorder %s20, 3
        %s167 = scalar_select %p166, %s20, 3
        %p168 = scmp.lt.s32.totalorder %s164, 31
        %s169 = scalar_select %p168, %s164, 31
        %p170 = scmp.lt.s32.totalorder %s165, 1
        %s171 = scalar_select %p170, %s165, 1
        %s172 = smul.addr %s169, 2
        %s173 = sadd.s32 %s171, %s172
        %s174 = smul.addr %s167, 64
        %s175 = sadd.s32 %s173, %s174
        %s176 = smul.addr %s175, 8
        %s177 = scalar_lea.vmem %s2, %s176
        %s178 = smul.u32 32, %s21
        %s179 = smul.u32 2, %s22
        %p180 = scmp.lt.s32.totalorder %s20, 3
        %s181 = scalar_select %p180, %s20, 3
        %p182 = scmp.lt.s32.totalorder %s178, 31
        %s183 = scalar_select %p182, %s178, 31
        %p184 = scmp.lt.s32.totalorder %s179, 1
        %s185 = scalar_select %p184, %s179, 1
        %s186 = smul.addr %s183, 2
        %s187 = sadd.s32 %s185, %s186
        %s188 = smul.addr %s181, 64
        %s189 = sadd.s32 %s187, %s188
        %s190 = smul.addr %s189, 8
        %s191 = scalar_lea.vmem %s2, %s190
        %s192 = smul.u32 32, %s21
        %s193 = smul.u32 2, %s22
        %s194 = sld [smem:[#allocation2 + %s20]]
        %s195 = sand.u32 2147483647, %s194
        %s196 = sadd.f32 %s195, 1.0
        %s197 = sld [smem:[#allocation4 + %s20]]
        %v198 = vstv %s197
        %v199 = vmul.f32 %v198, 1.442695
        %v200 = vpow.pop %v199
        %s201 = vtos %v200
        %s202 = smul.f32 %s201, %s201
        %s203 = smul.f32 %s196, %s196
        %v204 = vstv %s203
        %v205 = vrcp.pop %v204
        %s206 = vtos %v205
        %s207 = smul.f32 -0.5, %s206
        %s208 = smul.u32 %s21, 256
        %v209 = vlaneseq
        %v210 = vshrl.u32 %v209, 7
        %v211 = vadd.s32 %v210, 8
        %v212 = vadd.s32 %v210, 16
        %v213 = vadd.s32 %v210, 24
        %v214 = vadd.s32 %v210, 32
        %v215 = vadd.s32 %v210, 40
        %v216 = vadd.s32 %v210, 48
        %v217 = vadd.s32 %v210, 56
        %v218 = vadd.s32 %v210, 64
        %v219 = vadd.s32 %v210, 72
        %v220 = vadd.s32 %v210, 80
        %v221 = vadd.s32 %v210, 88
        %v222 = vadd.s32 %v210, 96
        %v223 = vadd.s32 %v210, 104
        %v224 = vadd.s32 %v210, 112
        %v225 = vadd.s32 %v210, 120
        %v226 = vadd.s32 %v210, 128
        %v227 = vadd.s32 %v210, 136
        %v228 = vadd.s32 %v210, 144
        %v229 = vadd.s32 %v210, 152
        %v230 = vadd.s32 %v210, 160
        %v231 = vadd.s32 %v210, 168
        %v232 = vadd.s32 %v210, 176
        %v233 = vadd.s32 %v210, 184
        %v234 = vadd.s32 %v210, 192
        %v235 = vadd.s32 %v210, 200
        %v236 = vadd.s32 %v210, 208
        %v237 = vadd.s32 %v210, 216
        %v238 = vadd.s32 %v210, 224
        %v239 = vadd.s32 %v210, 232
        %v240 = vadd.s32 %v210, 240
        %v241 = vadd.s32 %v210, 248
        %v242 = vstv %s208
        %v243 = vadd.s32 %v242, %v210
        %v244 = vadd.s32 %v242, %v211
        %v245 = vadd.s32 %v242, %v212
        %v246 = vadd.s32 %v242, %v213
        %v247 = vadd.s32 %v242, %v214
        %v248 = vadd.s32 %v242, %v215
        %v249 = vadd.s32 %v242, %v216
        %v250 = vadd.s32 %v242, %v217
        %v251 = vadd.s32 %v242, %v218
        %v252 = vadd.s32 %v242, %v219
        %v253 = vadd.s32 %v242, %v220
        %v254 = vadd.s32 %v242, %v221
        %v255 = vadd.s32 %v242, %v222
        %v256 = vadd.s32 %v242, %v223
        %v257 = vadd.s32 %v242, %v224
        %v258 = vadd.s32 %v242, %v225
        %v259 = vadd.s32 %v242, %v226
        %v260 = vadd.s32 %v242, %v227
        %v261 = vadd.s32 %v242, %v228
        %v262 = vadd.s32 %v242, %v229
        %v263 = vadd.s32 %v242, %v230
        %v264 = vadd.s32 %v242, %v231
        %v265 = vadd.s32 %v242, %v232
        %v266 = vadd.s32 %v242, %v233
        %v267 = vadd.s32 %v242, %v234
        %v268 = vadd.s32 %v242, %v235
        %v269 = vadd.s32 %v242, %v236
        %v270 = vadd.s32 %v242, %v237
        %v271 = vadd.s32 %v242, %v238
        %v272 = vadd.s32 %v242, %v239
        %v273 = vadd.s32 %v242, %v240
        %v274 = vadd.s32 %v242, %v241
        %s275 = smul.u32 %s22, 256
        %v276 = vlaneseq
        %v277 = vand.u32 %v276, 127
        %v278 = vadd.s32 %v277, 128
        %v279 = vstv %s275
        %v280 = vadd.s32 %v279, %v277
        %v281 = vadd.s32 %v279, %v278
        %v282 = vsub.s32 %v243, %v280
        %v283 = vsub.s32 %v243, %v281
        %v284 = vsub.s32 %v244, %v280
        %v285 = vsub.s32 %v244, %v281
        %v286 = vsub.s32 %v245, %v280
        %v287 = vsub.s32 %v245, %v281
        %v288 = vsub.s32 %v246, %v280
        %v289 = vsub.s32 %v246, %v281
        %v290 = vsub.s32 %v247, %v280
        %v291 = vsub.s32 %v247, %v281
        %v292 = vsub.s32 %v248, %v280
        %v293 = vsub.s32 %v248, %v281
        %v294 = vsub.s32 %v249, %v280
        %v295 = vsub.s32 %v249, %v281
        %v296 = vsub.s32 %v250, %v280
        %v297 = vsub.s32 %v250, %v281
        %v298 = vsub.s32 %v251, %v280
        %v299 = vsub.s32 %v251, %v281
        %v300 = vsub.s32 %v252, %v280
        %v301 = vsub.s32 %v252, %v281
        %v302 = vsub.s32 %v253, %v280
        %v303 = vsub.s32 %v253, %v281
        %v304 = vsub.s32 %v254, %v280
        %v305 = vsub.s32 %v254, %v281
        %v306 = vsub.s32 %v255, %v280
        %v307 = vsub.s32 %v255, %v281
        %v308 = vsub.s32 %v256, %v280
        %v309 = vsub.s32 %v256, %v281
        %v310 = vsub.s32 %v257, %v280
        %v311 = vsub.s32 %v257, %v281
        %v312 = vsub.s32 %v258, %v280
        %v313 = vsub.s32 %v258, %v281
        %v314 = vsub.s32 %v259, %v280
        %v315 = vsub.s32 %v259, %v281
        %v316 = vsub.s32 %v260, %v280
        %v317 = vsub.s32 %v260, %v281
        %v318 = vsub.s32 %v261, %v280
        %v319 = vsub.s32 %v261, %v281
        %v320 = vsub.s32 %v262, %v280
        %v321 = vsub.s32 %v262, %v281
        %v322 = vsub.s32 %v263, %v280
        %v323 = vsub.s32 %v263, %v281
        %v324 = vsub.s32 %v264, %v280
        %v325 = vsub.s32 %v264, %v281
        %v326 = vsub.s32 %v265, %v280
        %v327 = vsub.s32 %v265, %v281
        %v328 = vsub.s32 %v266, %v280
        %v329 = vsub.s32 %v266, %v281
        %v330 = vsub.s32 %v267, %v280
        %v331 = vsub.s32 %v267, %v281
        %v332 = vsub.s32 %v268, %v280
        %v333 = vsub.s32 %v268, %v281
        %v334 = vsub.s32 %v269, %v280
        %v335 = vsub.s32 %v269, %v281
        %v336 = vsub.s32 %v270, %v280
        %v337 = vsub.s32 %v270, %v281
        %v338 = vsub.s32 %v271, %v280
        %v339 = vsub.s32 %v271, %v281
        %v340 = vsub.s32 %v272, %v280
        %v341 = vsub.s32 %v272, %v281
        %v342 = vsub.s32 %v273, %v280
        %v343 = vsub.s32 %v273, %v281
        %v344 = vsub.s32 %v274, %v280
        %v345 = vsub.s32 %v274, %v281
        %v346 = vcvt.s32.f32 %v282
        %v347 = vcvt.s32.f32 %v283
        %v348 = vcvt.s32.f32 %v284
        %v349 = vcvt.s32.f32 %v285
        %v350 = vcvt.s32.f32 %v286
        %v351 = vcvt.s32.f32 %v287
        %v352 = vcvt.s32.f32 %v288
        %v353 = vcvt.s32.f32 %v289
        %v354 = vcvt.s32.f32 %v290
        %v355 = vcvt.s32.f32 %v291
        %v356 = vcvt.s32.f32 %v292
        %v357 = vcvt.s32.f32 %v293
        %v358 = vcvt.s32.f32 %v294
        %v359 = vcvt.s32.f32 %v295
        %v360 = vcvt.s32.f32 %v296
        %v361 = vcvt.s32.f32 %v297
        %v362 = vcvt.s32.f32 %v298
        %v363 = vcvt.s32.f32 %v299
        %v364 = vcvt.s32.f32 %v300
        %v365 = vcvt.s32.f32 %v301
        %v366 = vcvt.s32.f32 %v302
        %v367 = vcvt.s32.f32 %v303
        %v368 = vcvt.s32.f32 %v304
        %v369 = vcvt.s32.f32 %v305
        %v370 = vcvt.s32.f32 %v306
        %v371 = vcvt.s32.f32 %v307
        %v372 = vcvt.s32.f32 %v308
        %v373 = vcvt.s32.f32 %v309
        %v374 = vcvt.s32.f32 %v310
        %v375 = vcvt.s32.f32 %v311
        %v376 = vcvt.s32.f32 %v312
        %v377 = vcvt.s32.f32 %v313
        %v378 = vcvt.s32.f32 %v314
        %v379 = vcvt.s32.f32 %v315
        %v380 = vcvt.s32.f32 %v316
        %v381 = vcvt.s32.f32 %v317
        %v382 = vcvt.s32.f32 %v318
        %v383 = vcvt.s32.f32 %v319
        %v384 = vcvt.s32.f32 %v320
        %v385 = vcvt.s32.f32 %v321
        %v386 = vcvt.s32.f32 %v322
        %v387 = vcvt.s32.f32 %v323
        %v388 = vcvt.s32.f32 %v324
        %v389 = vcvt.s32.f32 %v325
        %v390 = vcvt.s32.f32 %v326
        %v391 = vcvt.s32.f32 %v327
        %v392 = vcvt.s32.f32 %v328
        %v393 = vcvt.s32.f32 %v329
        %v394 = vcvt.s32.f32 %v330
        %v395 = vcvt.s32.f32 %v331
        %v396 = vcvt.s32.f32 %v332
        %v397 = vcvt.s32.f32 %v333
        %v398 = vcvt.s32.f32 %v334
        %v399 = vcvt.s32.f32 %v335
        %v400 = vcvt.s32.f32 %v336
        %v401 = vcvt.s32.f32 %v337
        %v402 = vcvt.s32.f32 %v338
        %v403 = vcvt.s32.f32 %v339
        %v404 = vcvt.s32.f32 %v340
        %v405 = vcvt.s32.f32 %v341
        %v406 = vcvt.s32.f32 %v342
        %v407 = vcvt.s32.f32 %v343
        %v408 = vcvt.s32.f32 %v344
        %v409 = vcvt.s32.f32 %v345
        %v410 = vmul.f32 %v346, %v346
        %v411 = vmul.f32 %v347, %v347
        %v412 = vmul.f32 %v348, %v348
        %v413 = vmul.f32 %v349, %v349
        %v414 = vmul.f32 %v350, %v350
        %v415 = vmul.f32 %v351, %v351
        %v416 = vmul.f32 %v352, %v352
        %v417 = vmul.f32 %v353, %v353
        %v418 = vmul.f32 %v354, %v354
        %v419 = vmul.f32 %v355, %v355
        %v420 = vmul.f32 %v356, %v356
        %v421 = vmul.f32 %v357, %v357
        %v422 = vmul.f32 %v358, %v358
        %v423 = vmul.f32 %v359, %v359
        %v424 = vmul.f32 %v360, %v360
        %v425 = vmul.f32 %v361, %v361
        %v426 = vmul.f32 %v362, %v362
        %v427 = vmul.f32 %v363, %v363
        %v428 = vmul.f32 %v364, %v364
        %v429 = vmul.f32 %v365, %v365
        %v430 = vmul.f32 %v366, %v366
        %v431 = vmul.f32 %v367, %v367
        %v432 = vmul.f32 %v368, %v368
        %v433 = vmul.f32 %v369, %v369
        %v434 = vmul.f32 %v370, %v370
        %v435 = vmul.f32 %v371, %v371
        %v436 = vmul.f32 %v372, %v372
        %v437 = vmul.f32 %v373, %v373
        %v438 = vmul.f32 %v374, %v374
        %v439 = vmul.f32 %v375, %v375
        %v440 = vmul.f32 %v376, %v376
        %v441 = vmul.f32 %v377, %v377
        %v442 = vmul.f32 %v378, %v378
        %v443 = vmul.f32 %v379, %v379
        %v444 = vmul.f32 %v380, %v380
        %v445 = vmul.f32 %v381, %v381
        %v446 = vmul.f32 %v382, %v382
        %v447 = vmul.f32 %v383, %v383
        %v448 = vmul.f32 %v384, %v384
        %v449 = vmul.f32 %v385, %v385
        %v450 = vmul.f32 %v386, %v386
        %v451 = vmul.f32 %v387, %v387
        %v452 = vmul.f32 %v388, %v388
        %v453 = vmul.f32 %v389, %v389
        %v454 = vmul.f32 %v390, %v390
        %v455 = vmul.f32 %v391, %v391
        %v456 = vmul.f32 %v392, %v392
        %v457 = vmul.f32 %v393, %v393
        %v458 = vmul.f32 %v394, %v394
        %v459 = vmul.f32 %v395, %v395
        %v460 = vmul.f32 %v396, %v396
        %v461 = vmul.f32 %v397, %v397
        %v462 = vmul.f32 %v398, %v398
        %v463 = vmul.f32 %v399, %v399
        %v464 = vmul.f32 %v400, %v400
        %v465 = vmul.f32 %v401, %v401
        %v466 = vmul.f32 %v402, %v402
        %v467 = vmul.f32 %v403, %v403
        %v468 = vmul.f32 %v404, %v404
        %v469 = vmul.f32 %v405, %v405
        %v470 = vmul.f32 %v406, %v406
        %v471 = vmul.f32 %v407, %v407
        %v472 = vmul.f32 %v408, %v408
        %v473 = vmul.f32 %v409, %v409
        %v474 = vstv %s207
        %v475 = vmul.f32 %v410, %v474
        %v476 = vmul.f32 %v411, %v474
        %v477 = vmul.f32 %v412, %v474
        %v478 = vmul.f32 %v413, %v474
        %v479 = vmul.f32 %v414, %v474
        %v480 = vmul.f32 %v415, %v474
        %v481 = vmul.f32 %v416, %v474
        %v482 = vmul.f32 %v417, %v474
        %v483 = vmul.f32 %v418, %v474
        %v484 = vmul.f32 %v419, %v474
        %v485 = vmul.f32 %v420, %v474
        %v486 = vmul.f32 %v421, %v474
        %v487 = vmul.f32 %v422, %v474
        %v488 = vmul.f32 %v423, %v474
        %v489 = vmul.f32 %v424, %v474
        %v490 = vmul.f32 %v425, %v474
        %v491 = vmul.f32 %v426, %v474
        %v492 = vmul.f32 %v427, %v474
        %v493 = vmul.f32 %v428, %v474
        %v494 = vmul.f32 %v429, %v474
        %v495 = vmul.f32 %v430, %v474
        %v496 = vmul.f32 %v431, %v474
        %v497 = vmul.f32 %v432, %v474
        %v498 = vmul.f32 %v433, %v474
        %v499 = vmul.f32 %v434, %v474
        %v500 = vmul.f32 %v435, %v474
        %v501 = vmul.f32 %v436, %v474
        %v502 = vmul.f32 %v437, %v474
        %v503 = vmul.f32 %v438, %v474
        %v504 = vmul.f32 %v439, %v474
        %v505 = vmul.f32 %v440, %v474
        %v506 = vmul.f32 %v441, %v474
        %v507 = vmul.f32 %v442, %v474
        %v508 = vmul.f32 %v443, %v474
        %v509 = vmul.f32 %v444, %v474
        %v510 = vmul.f32 %v445, %v474
        %v511 = vmul.f32 %v446, %v474
        %v512 = vmul.f32 %v447, %v474
        %v513 = vmul.f32 %v448, %v474
        %v514 = vmul.f32 %v449, %v474
        %v515 = vmul.f32 %v450, %v474
        %v516 = vmul.f32 %v451, %v474
        %v517 = vmul.f32 %v452, %v474
        %v518 = vmul.f32 %v453, %v474
        %v519 = vmul.f32 %v454, %v474
        %v520 = vmul.f32 %v455, %v474
        %v521 = vmul.f32 %v456, %v474
        %v522 = vmul.f32 %v457, %v474
        %v523 = vmul.f32 %v458, %v474
        %v524 = vmul.f32 %v459, %v474
        %v525 = vmul.f32 %v460, %v474
        %v526 = vmul.f32 %v461, %v474
        %v527 = vmul.f32 %v462, %v474
        %v528 = vmul.f32 %v463, %v474
        %v529 = vmul.f32 %v464, %v474
        %v530 = vmul.f32 %v465, %v474
        %v531 = vmul.f32 %v466, %v474
        %v532 = vmul.f32 %v467, %v474
        %v533 = vmul.f32 %v468, %v474
        %v534 = vmul.f32 %v469, %v474
        %v535 = vmul.f32 %v470, %v474
        %v536 = vmul.f32 %v471, %v474
        %v537 = vmul.f32 %v472, %v474
        %v538 = vmul.f32 %v473, %v474
        %v539 = vmul.f32 %v475, 1.442695
        %v540 = vpow.pop %v539
        %v541 = vmul.f32 %v476, 1.442695
        %v542 = vpow.pop %v541
        %v543 = vmul.f32 %v477, 1.442695
        %v544 = vpow.pop %v543
        %v545 = vmul.f32 %v478, 1.442695
        %v546 = vpow.pop %v545
        %v547 = vmul.f32 %v479, 1.442695
        %v548 = vpow.pop %v547
        %v549 = vmul.f32 %v480, 1.442695
        %v550 = vpow.pop %v549
        %v551 = vmul.f32 %v481, 1.442695
        %v552 = vpow.pop %v551
        %v553 = vmul.f32 %v482, 1.442695
        %v554 = vpow.pop %v553
        %v555 = vmul.f32 %v483, 1.442695
        %v556 = vpow.pop %v555
        %v557 = vmul.f32 %v484, 1.442695
        %v558 = vpow.pop %v557
        %v559 = vmul.f32 %v485, 1.442695
        %v560 = vpow.pop %v559
        %v561 = vmul.f32 %v486, 1.442695
        %v562 = vpow.pop %v561
        %v563 = vmul.f32 %v487, 1.442695
        %v564 = vpow.pop %v563
        %v565 = vmul.f32 %v488, 1.442695
        %v566 = vpow.pop %v565
        %v567 = vmul.f32 %v489, 1.442695
        %v568 = vpow.pop %v567
        %v569 = vmul.f32 %v490, 1.442695
        %v570 = vpow.pop %v569
        %v571 = vmul.f32 %v491, 1.442695
        %v572 = vpow.pop %v571
        %v573 = vmul.f32 %v492, 1.442695
        %v574 = vpow.pop %v573
        %v575 = vmul.f32 %v493, 1.442695
        %v576 = vpow.pop %v575
        %v577 = vmul.f32 %v494, 1.442695
        %v578 = vpow.pop %v577
        %v579 = vmul.f32 %v495, 1.442695
        %v580 = vpow.pop %v579
        %v581 = vmul.f32 %v496, 1.442695
        %v582 = vpow.pop %v581
        %v583 = vmul.f32 %v497, 1.442695
        %v584 = vpow.pop %v583
        %v585 = vmul.f32 %v498, 1.442695
        %v586 = vpow.pop %v585
        %v587 = vmul.f32 %v499, 1.442695
        %v588 = vpow.pop %v587
        %v589 = vmul.f32 %v500, 1.442695
        %v590 = vpow.pop %v589
        %v591 = vmul.f32 %v501, 1.442695
        %v592 = vpow.pop %v591
        %v593 = vmul.f32 %v502, 1.442695
        %v594 = vpow.pop %v593
        %v595 = vmul.f32 %v503, 1.442695
        %v596 = vpow.pop %v595
        %v597 = vmul.f32 %v504, 1.442695
        %v598 = vpow.pop %v597
        %v599 = vmul.f32 %v505, 1.442695
        %v600 = vpow.pop %v599
        %v601 = vmul.f32 %v506, 1.442695
        %v602 = vpow.pop %v601
        %v603 = vmul.f32 %v507, 1.442695
        %v604 = vpow.pop %v603
        %v605 = vmul.f32 %v508, 1.442695
        %v606 = vpow.pop %v605
        %v607 = vmul.f32 %v509, 1.442695
        %v608 = vpow.pop %v607
        %v609 = vmul.f32 %v510, 1.442695
        %v610 = vpow.pop %v609
        %v611 = vmul.f32 %v511, 1.442695
        %v612 = vpow.pop %v611
        %v613 = vmul.f32 %v512, 1.442695
        %v614 = vpow.pop %v613
        %v615 = vmul.f32 %v513, 1.442695
        %v616 = vpow.pop %v615
        %v617 = vmul.f32 %v514, 1.442695
        %v618 = vpow.pop %v617
        %v619 = vmul.f32 %v515, 1.442695
        %v620 = vpow.pop %v619
        %v621 = vmul.f32 %v516, 1.442695
        %v622 = vpow.pop %v621
        %v623 = vmul.f32 %v517, 1.442695
        %v624 = vpow.pop %v623
        %v625 = vmul.f32 %v518, 1.442695
        %v626 = vpow.pop %v625
        %v627 = vmul.f32 %v519, 1.442695
        %v628 = vpow.pop %v627
        %v629 = vmul.f32 %v520, 1.442695
        %v630 = vpow.pop %v629
        %v631 = vmul.f32 %v521, 1.442695
        %v632 = vpow.pop %v631
        %v633 = vmul.f32 %v522, 1.442695
        %v634 = vpow.pop %v633
        %v635 = vmul.f32 %v523, 1.442695
        %v636 = vpow.pop %v635
        %v637 = vmul.f32 %v524, 1.442695
        %v638 = vpow.pop %v637
        %v639 = vmul.f32 %v525, 1.442695
        %v640 = vpow.pop %v639
        %v641 = vmul.f32 %v526, 1.442695
        %v642 = vpow.pop %v641
        %v643 = vmul.f32 %v527, 1.442695
        %v644 = vpow.pop %v643
        %v645 = vmul.f32 %v528, 1.442695
        %v646 = vpow.pop %v645
        %v647 = vmul.f32 %v529, 1.442695
        %v648 = vpow.pop %v647
        %v649 = vmul.f32 %v530, 1.442695
        %v650 = vpow.pop %v649
        %v651 = vmul.f32 %v531, 1.442695
        %v652 = vpow.pop %v651
        %v653 = vmul.f32 %v532, 1.442695
        %v654 = vpow.pop %v653
        %v655 = vmul.f32 %v533, 1.442695
        %v656 = vpow.pop %v655
        %v657 = vmul.f32 %v534, 1.442695
        %v658 = vpow.pop %v657
        %v659 = vmul.f32 %v535, 1.442695
        %v660 = vpow.pop %v659
        %v661 = vmul.f32 %v536, 1.442695
        %v662 = vpow.pop %v661
        %v663 = vmul.f32 %v537, 1.442695
        %v664 = vpow.pop %v663
        %v665 = vmul.f32 %v538, 1.442695
        %v666 = vpow.pop %v665
        %v667 = vstv %s202
        %v668 = vmul.f32 %v667, %v540
        %v669 = vmul.f32 %v667, %v542
        %v670 = vmul.f32 %v667, %v544
        %v671 = vmul.f32 %v667, %v546
        %v672 = vmul.f32 %v667, %v548
        %v673 = vmul.f32 %v667, %v550
        %v674 = vmul.f32 %v667, %v552
        %v675 = vmul.f32 %v667, %v554
        %v676 = vmul.f32 %v667, %v556
        %v677 = vmul.f32 %v667, %v558
        %v678 = vmul.f32 %v667, %v560
        %v679 = vmul.f32 %v667, %v562
        %v680 = vmul.f32 %v667, %v564
        %v681 = vmul.f32 %v667, %v566
        %v682 = vmul.f32 %v667, %v568
        %v683 = vmul.f32 %v667, %v570
        %v684 = vmul.f32 %v667, %v572
        %v685 = vmul.f32 %v667, %v574
        %v686 = vmul.f32 %v667, %v576
        %v687 = vmul.f32 %v667, %v578
        %v688 = vmul.f32 %v667, %v580
        %v689 = vmul.f32 %v667, %v582
        %v690 = vmul.f32 %v667, %v584
        %v691 = vmul.f32 %v667, %v586
        %v692 = vmul.f32 %v667, %v588
        %v693 = vmul.f32 %v667, %v590
        %v694 = vmul.f32 %v667, %v592
        %v695 = vmul.f32 %v667, %v594
        %v696 = vmul.f32 %v667, %v596
        %v697 = vmul.f32 %v667, %v598
        %v698 = vmul.f32 %v667, %v600
        %v699 = vmul.f32 %v667, %v602
        %v700 = vmul.f32 %v667, %v604
        %v701 = vmul.f32 %v667, %v606
        %v702 = vmul.f32 %v667, %v608
        %v703 = vmul.f32 %v667, %v610
        %v704 = vmul.f32 %v667, %v612
        %v705 = vmul.f32 %v667, %v614
        %v706 = vmul.f32 %v667, %v616
        %v707 = vmul.f32 %v667, %v618
        %v708 = vmul.f32 %v667, %v620
        %v709 = vmul.f32 %v667, %v622
        %v710 = vmul.f32 %v667, %v624
        %v711 = vmul.f32 %v667, %v626
        %v712 = vmul.f32 %v667, %v628
        %v713 = vmul.f32 %v667, %v630
        %v714 = vmul.f32 %v667, %v632
        %v715 = vmul.f32 %v667, %v634
        %v716 = vmul.f32 %v667, %v636
        %v717 = vmul.f32 %v667, %v638
        %v718 = vmul.f32 %v667, %v640
        %v719 = vmul.f32 %v667, %v642
        %v720 = vmul.f32 %v667, %v644
        %v721 = vmul.f32 %v667, %v646
        %v722 = vmul.f32 %v667, %v648
        %v723 = vmul.f32 %v667, %v650
        %v724 = vmul.f32 %v667, %v652
        %v725 = vmul.f32 %v667, %v654
        %v726 = vmul.f32 %v667, %v656
        %v727 = vmul.f32 %v667, %v658
        %v728 = vmul.f32 %v667, %v660
        %v729 = vmul.f32 %v667, %v662
        %v730 = vmul.f32 %v667, %v664
        %v731 = vmul.f32 %v667, %v666
        %732 = vst [vmem:[%s191] sm:$0xff] %v668
        %733 = vst [vmem:[%s191 + $0x8] sm:$0xff] %v669
        %734 = vst [vmem:[%s191 + $0x10] sm:$0xff] %v670
        %735 = vst [vmem:[%s191 + $0x18] sm:$0xff] %v671
        %736 = vst [vmem:[%s191 + $0x20] sm:$0xff] %v672
        %737 = vst [vmem:[%s191 + $0x28] sm:$0xff] %v673
        %738 = vst [vmem:[%s191 + $0x30] sm:$0xff] %v674
        %739 = vst [vmem:[%s191 + $0x38] sm:$0xff] %v675
        %740 = vst [vmem:[%s191 + $0x40] sm:$0xff] %v676
        %741 = vst [vmem:[%s191 + $0x48] sm:$0xff] %v677
        %742 = vst [vmem:[%s191 + $0x50] sm:$0xff] %v678
        %743 = vst [vmem:[%s191 + $0x58] sm:$0xff] %v679
        %744 = vst [vmem:[%s191 + $0x60] sm:$0xff] %v680
        %745 = vst [vmem:[%s191 + $0x68] sm:$0xff] %v681
        %746 = vst [vmem:[%s191 + $0x70] sm:$0xff] %v682
        %747 = vst [vmem:[%s191 + $0x78] sm:$0xff] %v683
        %748 = vst [vmem:[%s191 + $0x80] sm:$0xff] %v684
        %749 = vst [vmem:[%s191 + $0x88] sm:$0xff] %v685
        %750 = vst [vmem:[%s191 + $0x90] sm:$0xff] %v686
        %751 = vst [vmem:[%s191 + $0x98] sm:$0xff] %v687
        %752 = vst [vmem:[%s191 + $0xa0] sm:$0xff] %v688
        %753 = vst [vmem:[%s191 + $0xa8] sm:$0xff] %v689
        %754 = vst [vmem:[%s191 + $0xb0] sm:$0xff] %v690
        %755 = vst [vmem:[%s191 + $0xb8] sm:$0xff] %v691
        %756 = vst [vmem:[%s191 + $0xc0] sm:$0xff] %v692
        %757 = vst [vmem:[%s191 + $0xc8] sm:$0xff] %v693
        %758 = vst [vmem:[%s191 + $0xd0] sm:$0xff] %v694
        %759 = vst [vmem:[%s191 + $0xd8] sm:$0xff] %v695
        %760 = vst [vmem:[%s191 + $0xe0] sm:$0xff] %v696
        %761 = vst [vmem:[%s191 + $0xe8] sm:$0xff] %v697
        %762 = vst [vmem:[%s191 + $0xf0] sm:$0xff] %v698
        %763 = vst [vmem:[%s191 + $0xf8] sm:$0xff] %v699
        %764 = vst [vmem:[%s191 + $0x100] sm:$0xff] %v700
        %765 = vst [vmem:[%s191 + $0x108] sm:$0xff] %v701
        %766 = vst [vmem:[%s191 + $0x110] sm:$0xff] %v702
        %767 = vst [vmem:[%s191 + $0x118] sm:$0xff] %v703
        %768 = vst [vmem:[%s191 + $0x120] sm:$0xff] %v704
        %769 = vst [vmem:[%s191 + $0x128] sm:$0xff] %v705
        %770 = vst [vmem:[%s191 + $0x130] sm:$0xff] %v706
        %771 = vst [vmem:[%s191 + $0x138] sm:$0xff] %v707
        %772 = vst [vmem:[%s191 + $0x140] sm:$0xff] %v708
        %773 = vst [vmem:[%s191 + $0x148] sm:$0xff] %v709
        %774 = vst [vmem:[%s191 + $0x150] sm:$0xff] %v710
        %775 = vst [vmem:[%s191 + $0x158] sm:$0xff] %v711
        %776 = vst [vmem:[%s191 + $0x160] sm:$0xff] %v712
        %777 = vst [vmem:[%s191 + $0x168] sm:$0xff] %v713
        %778 = vst [vmem:[%s191 + $0x170] sm:$0xff] %v714
        %779 = vst [vmem:[%s191 + $0x178] sm:$0xff] %v715
        %780 = vst [vmem:[%s191 + $0x180] sm:$0xff] %v716
        %781 = vst [vmem:[%s191 + $0x188] sm:$0xff] %v717
        %782 = vst [vmem:[%s191 + $0x190] sm:$0xff] %v718
        %783 = vst [vmem:[%s191 + $0x198] sm:$0xff] %v719
        %784 = vst [vmem:[%s191 + $0x1a0] sm:$0xff] %v720
        %785 = vst [vmem:[%s191 + $0x1a8] sm:$0xff] %v721
        %786 = vst [vmem:[%s191 + $0x1b0] sm:$0xff] %v722
        %787 = vst [vmem:[%s191 + $0x1b8] sm:$0xff] %v723
        %788 = vst [vmem:[%s191 + $0x1c0] sm:$0xff] %v724
        %789 = vst [vmem:[%s191 + $0x1c8] sm:$0xff] %v725
        %790 = vst [vmem:[%s191 + $0x1d0] sm:$0xff] %v726
        %791 = vst [vmem:[%s191 + $0x1d8] sm:$0xff] %v727
        %792 = vst [vmem:[%s191 + $0x1e0] sm:$0xff] %v728
        %793 = vst [vmem:[%s191 + $0x1e8] sm:$0xff] %v729
        %794 = vst [vmem:[%s191 + $0x1f0] sm:$0xff] %v730
        %795 = vst [vmem:[%s191 + $0x1f8] sm:$0xff] %v731
        %p796 = scmp.eq.s32.totalorder %s21, %s22
        // Predicated region
        $region37: #{aladyn_forward.5} parent=27 // pred_check
          %p797 = pneg %p796
        $region38: #{aladyn_forward.5} parent=27 // pred_check_branch
          %799 = sbr.rel (%p797) target = $region40
        $region39: #{aladyn_forward.5} parent=27 // pred_region
          %vm800 = vcmp.eq.s32.totalorder %v243, %v280
          %vm801 = vcmp.eq.s32.totalorder %v243, %v281
          %vm802 = vcmp.eq.s32.totalorder %v244, %v280
          %vm803 = vcmp.eq.s32.totalorder %v244, %v281
          %vm804 = vcmp.eq.s32.totalorder %v245, %v280
          %vm805 = vcmp.eq.s32.totalorder %v245, %v281
          %vm806 = vcmp.eq.s32.totalorder %v246, %v280
          %vm807 = vcmp.eq.s32.totalorder %v246, %v281
          %vm808 = vcmp.eq.s32.totalorder %v247, %v280
          %vm809 = vcmp.eq.s32.totalorder %v247, %v281
          %vm810 = vcmp.eq.s32.totalorder %v248, %v280
          %vm811 = vcmp.eq.s32.totalorder %v248, %v281
          %vm812 = vcmp.eq.s32.totalorder %v249, %v280
          %vm813 = vcmp.eq.s32.totalorder %v249, %v281
          %vm814 = vcmp.eq.s32.totalorder %v250, %v280
          %vm815 = vcmp.eq.s32.totalorder %v250, %v281
          %vm816 = vcmp.eq.s32.totalorder %v251, %v280
          %vm817 = vcmp.eq.s32.totalorder %v251, %v281
          %vm818 = vcmp.eq.s32.totalorder %v252, %v280
          %vm819 = vcmp.eq.s32.totalorder %v252, %v281
          %vm820 = vcmp.eq.s32.totalorder %v253, %v280
          %vm821 = vcmp.eq.s32.totalorder %v253, %v281
          %vm822 = vcmp.eq.s32.totalorder %v254, %v280
          %vm823 = vcmp.eq.s32.totalorder %v254, %v281
          %vm824 = vcmp.eq.s32.totalorder %v255, %v280
          %vm825 = vcmp.eq.s32.totalorder %v255, %v281
          %vm826 = vcmp.eq.s32.totalorder %v256, %v280
          %vm827 = vcmp.eq.s32.totalorder %v256, %v281
          %vm828 = vcmp.eq.s32.totalorder %v257, %v280
          %vm829 = vcmp.eq.s32.totalorder %v257, %v281
          %vm830 = vcmp.eq.s32.totalorder %v258, %v280
          %vm831 = vcmp.eq.s32.totalorder %v258, %v281
          %vm832 = vcmp.eq.s32.totalorder %v259, %v280
          %vm833 = vcmp.eq.s32.totalorder %v259, %v281
          %vm834 = vcmp.eq.s32.totalorder %v260, %v280
          %vm835 = vcmp.eq.s32.totalorder %v260, %v281
          %vm836 = vcmp.eq.s32.totalorder %v261, %v280
          %vm837 = vcmp.eq.s32.totalorder %v261, %v281
          %vm838 = vcmp.eq.s32.totalorder %v262, %v280
          %vm839 = vcmp.eq.s32.totalorder %v262, %v281
          %vm840 = vcmp.eq.s32.totalorder %v263, %v280
          %vm841 = vcmp.eq.s32.totalorder %v263, %v281
          %vm842 = vcmp.eq.s32.totalorder %v264, %v280
          %vm843 = vcmp.eq.s32.totalorder %v264, %v281
          %vm844 = vcmp.eq.s32.totalorder %v265, %v280
          %vm845 = vcmp.eq.s32.totalorder %v265, %v281
          %vm846 = vcmp.eq.s32.totalorder %v266, %v280
          %vm847 = vcmp.eq.s32.totalorder %v266, %v281
          %vm848 = vcmp.eq.s32.totalorder %v267, %v280
          %vm849 = vcmp.eq.s32.totalorder %v267, %v281
          %vm850 = vcmp.eq.s32.totalorder %v268, %v280
          %vm851 = vcmp.eq.s32.totalorder %v268, %v281
          %vm852 = vcmp.eq.s32.totalorder %v269, %v280
          %vm853 = vcmp.eq.s32.totalorder %v269, %v281
          %vm854 = vcmp.eq.s32.totalorder %v270, %v280
          %vm855 = vcmp.eq.s32.totalorder %v270, %v281
          %vm856 = vcmp.eq.s32.totalorder %v271, %v280
          %vm857 = vcmp.eq.s32.totalorder %v271, %v281
          %vm858 = vcmp.eq.s32.totalorder %v272, %v280
          %vm859 = vcmp.eq.s32.totalorder %v272, %v281
          %vm860 = vcmp.eq.s32.totalorder %v273, %v280
          %vm861 = vcmp.eq.s32.totalorder %v273, %v281
          %vm862 = vcmp.eq.s32.totalorder %v274, %v280
          %vm863 = vcmp.eq.s32.totalorder %v274, %v281
          %v864 = vsel %vm800, 1, 0
          %v865 = vsel %vm801, 1, 0
          %v866 = vsel %vm802, 1, 0
          %v867 = vsel %vm803, 1, 0
          %v868 = vsel %vm804, 1, 0
          %v869 = vsel %vm805, 1, 0
          %v870 = vsel %vm806, 1, 0
          %v871 = vsel %vm807, 1, 0
          %v872 = vsel %vm808, 1, 0
          %v873 = vsel %vm809, 1, 0
          %v874 = vsel %vm810, 1, 0
          %v875 = vsel %vm811, 1, 0
          %v876 = vsel %vm812, 1, 0
          %v877 = vsel %vm813, 1, 0
          %v878 = vsel %vm814, 1, 0
          %v879 = vsel %vm815, 1, 0
          %v880 = vsel %vm816, 1, 0
          %v881 = vsel %vm817, 1, 0
          %v882 = vsel %vm818, 1, 0
          %v883 = vsel %vm819, 1, 0
          %v884 = vsel %vm820, 1, 0
          %v885 = vsel %vm821, 1, 0
          %v886 = vsel %vm822, 1, 0
          %v887 = vsel %vm823, 1, 0
          %v888 = vsel %vm824, 1, 0
          %v889 = vsel %vm825, 1, 0
          %v890 = vsel %vm826, 1, 0
          %v891 = vsel %vm827, 1, 0
          %v892 = vsel %vm828, 1, 0
          %v893 = vsel %vm829, 1, 0
          %v894 = vsel %vm830, 1, 0
          %v895 = vsel %vm831, 1, 0
          %v896 = vsel %vm832, 1, 0
          %v897 = vsel %vm833, 1, 0
          %v898 = vsel %vm834, 1, 0
          %v899 = vsel %vm835, 1, 0
          %v900 = vsel %vm836, 1, 0
          %v901 = vsel %vm837, 1, 0
          %v902 = vsel %vm838, 1, 0
          %v903 = vsel %vm839, 1, 0
          %v904 = vsel %vm840, 1, 0
          %v905 = vsel %vm841, 1, 0
          %v906 = vsel %vm842, 1, 0
          %v907 = vsel %vm843, 1, 0
          %v908 = vsel %vm844, 1, 0
          %v909 = vsel %vm845, 1, 0
          %v910 = vsel %vm846, 1, 0
          %v911 = vsel %vm847, 1, 0
          %v912 = vsel %vm848, 1, 0
          %v913 = vsel %vm849, 1, 0
          %v914 = vsel %vm850, 1, 0
          %v915 = vsel %vm851, 1, 0
          %v916 = vsel %vm852, 1, 0
          %v917 = vsel %vm853, 1, 0
          %v918 = vsel %vm854, 1, 0
          %v919 = vsel %vm855, 1, 0
          %v920 = vsel %vm856, 1, 0
          %v921 = vsel %vm857, 1, 0
          %v922 = vsel %vm858, 1, 0
          %v923 = vsel %vm859, 1, 0
          %v924 = vsel %vm860, 1, 0
          %v925 = vsel %vm861, 1, 0
          %v926 = vsel %vm862, 1, 0
          %v927 = vsel %vm863, 1, 0
          %v928 = vcvt.s32.f32 %v864
          %v929 = vcvt.s32.f32 %v865
          %v930 = vcvt.s32.f32 %v866
          %v931 = vcvt.s32.f32 %v867
          %v932 = vcvt.s32.f32 %v868
          %v933 = vcvt.s32.f32 %v869
          %v934 = vcvt.s32.f32 %v870
          %v935 = vcvt.s32.f32 %v871
          %v936 = vcvt.s32.f32 %v872
          %v937 = vcvt.s32.f32 %v873
          %v938 = vcvt.s32.f32 %v874
          %v939 = vcvt.s32.f32 %v875
          %v940 = vcvt.s32.f32 %v876
          %v941 = vcvt.s32.f32 %v877
          %v942 = vcvt.s32.f32 %v878
          %v943 = vcvt.s32.f32 %v879
          %v944 = vcvt.s32.f32 %v880
          %v945 = vcvt.s32.f32 %v881
          %v946 = vcvt.s32.f32 %v882
          %v947 = vcvt.s32.f32 %v883
          %v948 = vcvt.s32.f32 %v884
          %v949 = vcvt.s32.f32 %v885
          %v950 = vcvt.s32.f32 %v886
          %v951 = vcvt.s32.f32 %v887
          %v952 = vcvt.s32.f32 %v888
          %v953 = vcvt.s32.f32 %v889
          %v954 = vcvt.s32.f32 %v890
          %v955 = vcvt.s32.f32 %v891
          %v956 = vcvt.s32.f32 %v892
          %v957 = vcvt.s32.f32 %v893
          %v958 = vcvt.s32.f32 %v894
          %v959 = vcvt.s32.f32 %v895
          %v960 = vcvt.s32.f32 %v896
          %v961 = vcvt.s32.f32 %v897
          %v962 = vcvt.s32.f32 %v898
          %v963 = vcvt.s32.f32 %v899
          %v964 = vcvt.s32.f32 %v900
          %v965 = vcvt.s32.f32 %v901
          %v966 = vcvt.s32.f32 %v902
          %v967 = vcvt.s32.f32 %v903
          %v968 = vcvt.s32.f32 %v904
          %v969 = vcvt.s32.f32 %v905
          %v970 = vcvt.s32.f32 %v906
          %v971 = vcvt.s32.f32 %v907
          %v972 = vcvt.s32.f32 %v908
          %v973 = vcvt.s32.f32 %v909
          %v974 = vcvt.s32.f32 %v910
          %v975 = vcvt.s32.f32 %v911
          %v976 = vcvt.s32.f32 %v912
          %v977 = vcvt.s32.f32 %v913
          %v978 = vcvt.s32.f32 %v914
          %v979 = vcvt.s32.f32 %v915
          %v980 = vcvt.s32.f32 %v916
          %v981 = vcvt.s32.f32 %v917
          %v982 = vcvt.s32.f32 %v918
          %v983 = vcvt.s32.f32 %v919
          %v984 = vcvt.s32.f32 %v920
          %v985 = vcvt.s32.f32 %v921
          %v986 = vcvt.s32.f32 %v922
          %v987 = vcvt.s32.f32 %v923
          %v988 = vcvt.s32.f32 %v924
          %v989 = vcvt.s32.f32 %v925
          %v990 = vcvt.s32.f32 %v926
          %v991 = vcvt.s32.f32 %v927
          %s992 = smul.f32 %s202, 0.001
          %s993 = sadd.f32 %s992, 0.01
          %v994 = vstv %s993
          %v995 = vmul.f32 %v994, %v928
          %v996 = vmul.f32 %v994, %v929
          %v997 = vmul.f32 %v994, %v930
          %v998 = vmul.f32 %v994, %v931
          %v999 = vmul.f32 %v994, %v932
          %v1000 = vmul.f32 %v994, %v933
          %v1001 = vmul.f32 %v994, %v934
          %v1002 = vmul.f32 %v994, %v935
          %v1003 = vmul.f32 %v994, %v936
          %v1004 = vmul.f32 %v994, %v937
          %v1005 = vmul.f32 %v994, %v938
          %v1006 = vmul.f32 %v994, %v939
          %v1007 = vmul.f32 %v994, %v940
          %v1008 = vmul.f32 %v994, %v941
          %v1009 = vmul.f32 %v994, %v942
          %v1010 = vmul.f32 %v994, %v943
          %v1011 = vmul.f32 %v994, %v944
          %v1012 = vmul.f32 %v994, %v945
          %v1013 = vmul.f32 %v994, %v946
          %v1014 = vmul.f32 %v994, %v947
          %v1015 = vmul.f32 %v994, %v948
          %v1016 = vmul.f32 %v994, %v949
          %v1017 = vmul.f32 %v994, %v950
          %v1018 = vmul.f32 %v994, %v951
          %v1019 = vmul.f32 %v994, %v952
          %v1020 = vmul.f32 %v994, %v953
          %v1021 = vmul.f32 %v994, %v954
          %v1022 = vmul.f32 %v994, %v955
          %v1023 = vmul.f32 %v994, %v956
          %v1024 = vmul.f32 %v994, %v957
          %v1025 = vmul.f32 %v994, %v958
          %v1026 = vmul.f32 %v994, %v959
          %v1027 = vmul.f32 %v994, %v960
          %v1028 = vmul.f32 %v994, %v961
          %v1029 = vmul.f32 %v994, %v962
          %v1030 = vmul.f32 %v994, %v963
          %v1031 = vmul.f32 %v994, %v964
          %v1032 = vmul.f32 %v994, %v965
          %v1033 = vmul.f32 %v994, %v966
          %v1034 = vmul.f32 %v994, %v967
          %v1035 = vmul.f32 %v994, %v968
          %v1036 = vmul.f32 %v994, %v969
          %v1037 = vmul.f32 %v994, %v970
          %v1038 = vmul.f32 %v994, %v971
          %v1039 = vmul.f32 %v994, %v972
          %v1040 = vmul.f32 %v994, %v973
          %v1041 = vmul.f32 %v994, %v974
          %v1042 = vmul.f32 %v994, %v975
          %v1043 = vmul.f32 %v994, %v976
          %v1044 = vmul.f32 %v994, %v977
          %v1045 = vmul.f32 %v994, %v978
          %v1046 = vmul.f32 %v994, %v979
          %v1047 = vmul.f32 %v994, %v980
          %v1048 = vmul.f32 %v994, %v981
          %v1049 = vmul.f32 %v994, %v982
          %v1050 = vmul.f32 %v994, %v983
          %v1051 = vmul.f32 %v994, %v984
          %v1052 = vmul.f32 %v994, %v985
          %v1053 = vmul.f32 %v994, %v986
          %v1054 = vmul.f32 %v994, %v987
          %v1055 = vmul.f32 %v994, %v988
          %v1056 = vmul.f32 %v994, %v989
          %v1057 = vmul.f32 %v994, %v990
          %v1058 = vmul.f32 %v994, %v991
          %v1059 = vadd.f32 %v668, %v995
          %v1060 = vadd.f32 %v669, %v996
          %v1061 = vadd.f32 %v670, %v997
          %v1062 = vadd.f32 %v671, %v998
          %v1063 = vadd.f32 %v672, %v999
          %v1064 = vadd.f32 %v673, %v1000
          %v1065 = vadd.f32 %v674, %v1001
          %v1066 = vadd.f32 %v675, %v1002
          %v1067 = vadd.f32 %v676, %v1003
          %v1068 = vadd.f32 %v677, %v1004
          %v1069 = vadd.f32 %v678, %v1005
          %v1070 = vadd.f32 %v679, %v1006
          %v1071 = vadd.f32 %v680, %v1007
          %v1072 = vadd.f32 %v681, %v1008
          %v1073 = vadd.f32 %v682, %v1009
          %v1074 = vadd.f32 %v683, %v1010
          %v1075 = vadd.f32 %v684, %v1011
          %v1076 = vadd.f32 %v685, %v1012
          %v1077 = vadd.f32 %v686, %v1013
          %v1078 = vadd.f32 %v687, %v1014
          %v1079 = vadd.f32 %v688, %v1015
          %v1080 = vadd.f32 %v689, %v1016
          %v1081 = vadd.f32 %v690, %v1017
          %v1082 = vadd.f32 %v691, %v1018
          %v1083 = vadd.f32 %v692, %v1019
          %v1084 = vadd.f32 %v693, %v1020
          %v1085 = vadd.f32 %v694, %v1021
          %v1086 = vadd.f32 %v695, %v1022
          %v1087 = vadd.f32 %v696, %v1023
          %v1088 = vadd.f32 %v697, %v1024
          %v1089 = vadd.f32 %v698, %v1025
          %v1090 = vadd.f32 %v699, %v1026
          %v1091 = vadd.f32 %v700, %v1027
          %v1092 = vadd.f32 %v701, %v1028
          %v1093 = vadd.f32 %v702, %v1029
          %v1094 = vadd.f32 %v703, %v1030
          %v1095 = vadd.f32 %v704, %v1031
          %v1096 = vadd.f32 %v705, %v1032
          %v1097 = vadd.f32 %v706, %v1033
          %v1098 = vadd.f32 %v707, %v1034
          %v1099 = vadd.f32 %v708, %v1035
          %v1100 = vadd.f32 %v709, %v1036
          %v1101 = vadd.f32 %v710, %v1037
          %v1102 = vadd.f32 %v711, %v1038
          %v1103 = vadd.f32 %v712, %v1039
          %v1104 = vadd.f32 %v713, %v1040
          %v1105 = vadd.f32 %v714, %v1041
          %v1106 = vadd.f32 %v715, %v1042
          %v1107 = vadd.f32 %v716, %v1043
          %v1108 = vadd.f32 %v717, %v1044
          %v1109 = vadd.f32 %v718, %v1045
          %v1110 = vadd.f32 %v719, %v1046
          %v1111 = vadd.f32 %v720, %v1047
          %v1112 = vadd.f32 %v721, %v1048
          %v1113 = vadd.f32 %v722, %v1049
          %v1114 = vadd.f32 %v723, %v1050
          %v1115 = vadd.f32 %v724, %v1051
          %v1116 = vadd.f32 %v725, %v1052
          %v1117 = vadd.f32 %v726, %v1053
          %v1118 = vadd.f32 %v727, %v1054
          %v1119 = vadd.f32 %v728, %v1055
          %v1120 = vadd.f32 %v729, %v1056
          %v1121 = vadd.f32 %v730, %v1057
          %v1122 = vadd.f32 %v731, %v1058
          %1123 = vst [vmem:[%s191] sm:$0xff] %v1059
          %1124 = vst [vmem:[%s191 + $0x8] sm:$0xff] %v1060
          %1125 = vst [vmem:[%s191 + $0x10] sm:$0xff] %v1061
          %1126 = vst [vmem:[%s191 + $0x18] sm:$0xff] %v1062
          %1127 = vst [vmem:[%s191 + $0x20] sm:$0xff] %v1063
          %1128 = vst [vmem:[%s191 + $0x28] sm:$0xff] %v1064
          %1129 = vst [vmem:[%s191 + $0x30] sm:$0xff] %v1065
          %1130 = vst [vmem:[%s191 + $0x38] sm:$0xff] %v1066
          %1131 = vst [vmem:[%s191 + $0x40] sm:$0xff] %v1067
          %1132 = vst [vmem:[%s191 + $0x48] sm:$0xff] %v1068
          %1133 = vst [vmem:[%s191 + $0x50] sm:$0xff] %v1069
          %1134 = vst [vmem:[%s191 + $0x58] sm:$0xff] %v1070
          %1135 = vst [vmem:[%s191 + $0x60] sm:$0xff] %v1071
          %1136 = vst [vmem:[%s191 + $0x68] sm:$0xff] %v1072
          %1137 = vst [vmem:[%s191 + $0x70] sm:$0xff] %v1073
          %1138 = vst [vmem:[%s191 + $0x78] sm:$0xff] %v1074
          %1139 = vst [vmem:[%s191 + $0x80] sm:$0xff] %v1075
          %1140 = vst [vmem:[%s191 + $0x88] sm:$0xff] %v1076
          %1141 = vst [vmem:[%s191 + $0x90] sm:$0xff] %v1077
          %1142 = vst [vmem:[%s191 + $0x98] sm:$0xff] %v1078
          %1143 = vst [vmem:[%s191 + $0xa0] sm:$0xff] %v1079
          %1144 = vst [vmem:[%s191 + $0xa8] sm:$0xff] %v1080
          %1145 = vst [vmem:[%s191 + $0xb0] sm:$0xff] %v1081
          %1146 = vst [vmem:[%s191 + $0xb8] sm:$0xff] %v1082
          %1147 = vst [vmem:[%s191 + $0xc0] sm:$0xff] %v1083
          %1148 = vst [vmem:[%s191 + $0xc8] sm:$0xff] %v1084
          %1149 = vst [vmem:[%s191 + $0xd0] sm:$0xff] %v1085
          %1150 = vst [vmem:[%s191 + $0xd8] sm:$0xff] %v1086
          %1151 = vst [vmem:[%s191 + $0xe0] sm:$0xff] %v1087
          %1152 = vst [vmem:[%s191 + $0xe8] sm:$0xff] %v1088
          %1153 = vst [vmem:[%s191 + $0xf0] sm:$0xff] %v1089
          %1154 = vst [vmem:[%s191 + $0xf8] sm:$0xff] %v1090
          %1155 = vst [vmem:[%s191 + $0x100] sm:$0xff] %v1091
          %1156 = vst [vmem:[%s191 + $0x108] sm:$0xff] %v1092
          %1157 = vst [vmem:[%s191 + $0x110] sm:$0xff] %v1093
          %1158 = vst [vmem:[%s191 + $0x118] sm:$0xff] %v1094
          %1159 = vst [vmem:[%s191 + $0x120] sm:$0xff] %v1095
          %1160 = vst [vmem:[%s191 + $0x128] sm:$0xff] %v1096
          %1161 = vst [vmem:[%s191 + $0x130] sm:$0xff] %v1097
          %1162 = vst [vmem:[%s191 + $0x138] sm:$0xff] %v1098
          %1163 = vst [vmem:[%s191 + $0x140] sm:$0xff] %v1099
          %1164 = vst [vmem:[%s191 + $0x148] sm:$0xff] %v1100
          %1165 = vst [vmem:[%s191 + $0x150] sm:$0xff] %v1101
          %1166 = vst [vmem:[%s191 + $0x158] sm:$0xff] %v1102
          %1167 = vst [vmem:[%s191 + $0x160] sm:$0xff] %v1103
          %1168 = vst [vmem:[%s191 + $0x168] sm:$0xff] %v1104
          %1169 = vst [vmem:[%s191 + $0x170] sm:$0xff] %v1105
          %1170 = vst [vmem:[%s191 + $0x178] sm:$0xff] %v1106
          %1171 = vst [vmem:[%s191 + $0x180] sm:$0xff] %v1107
          %1172 = vst [vmem:[%s191 + $0x188] sm:$0xff] %v1108
          %1173 = vst [vmem:[%s191 + $0x190] sm:$0xff] %v1109
          %1174 = vst [vmem:[%s191 + $0x198] sm:$0xff] %v1110
          %1175 = vst [vmem:[%s191 + $0x1a0] sm:$0xff] %v1111
          %1176 = vst [vmem:[%s191 + $0x1a8] sm:$0xff] %v1112
          %1177 = vst [vmem:[%s191 + $0x1b0] sm:$0xff] %v1113
          %1178 = vst [vmem:[%s191 + $0x1b8] sm:$0xff] %v1114
          %1179 = vst [vmem:[%s191 + $0x1c0] sm:$0xff] %v1115
          %1180 = vst [vmem:[%s191 + $0x1c8] sm:$0xff] %v1116
          %1181 = vst [vmem:[%s191 + $0x1d0] sm:$0xff] %v1117
          %1182 = vst [vmem:[%s191 + $0x1d8] sm:$0xff] %v1118
          %1183 = vst [vmem:[%s191 + $0x1e0] sm:$0xff] %v1119
          %1184 = vst [vmem:[%s191 + $0x1e8] sm:$0xff] %v1120
          %1185 = vst [vmem:[%s191 + $0x1f0] sm:$0xff] %v1121
          %1186 = vst [vmem:[%s191 + $0x1f8] sm:$0xff] %v1122
        $region40: #{aladyn_forward.5} parent=27 // pred_fallthru
          _
        %s1187 = smul.u32 32, %s21
        %s1188 = smul.u32 2, %s22
        %p1189 = scmp.lt.s32.totalorder %s20, 3
        %s1190 = scalar_select %p1189, %s20, 3
        %p1191 = scmp.lt.s32.totalorder %s1187, 31
        %s1192 = scalar_select %p1191, %s1187, 31
        %p1193 = scmp.lt.s32.totalorder %s1188, 1
        %s1194 = scalar_select %p1193, %s1188, 1
        %s1195 = smul.addr %s1192, 2
        %s1196 = sadd.s32 %s1194, %s1195
        %s1197 = smul.addr %s1190, 64
        %s1198 = sadd.s32 %s1196, %s1197
        %s1199 = smul.addr %s1198, 8
        %s1200 = scalar_lea.vmem %s2, %s1199
        // Predicated region
        $region41: #{aladyn_forward.5} parent=27 // pred_check
          %p1201 = pneg %p98
        $region42: #{aladyn_forward.5} parent=27 // pred_check_branch
          %1203 = sbr.rel (%p1201) target = $region44
        $region43: #{aladyn_forward.5} parent=27 // pred_region
          %s1204 = smul.u32 32, %s21
          %s1205 = smul.u32 2, %s22
        $region44: #{aladyn_forward.5} parent=27 // pred_fallthru
          _
      $region28: #{aladyn_forward.5} parent=5 // pred_fallthru
        _
      %p1206 = scmp.le.s32.totalorder 2, %s10
      // Predicated region
      $region45: #{aladyn_forward.5} parent=5 // pred_check
        %p1207 = pneg %p1206
      $region46: #{aladyn_forward.5} parent=5 // pred_check_branch
        %1209 = sbr.rel (%p1207) target = $region48
      $region47: #{aladyn_forward.5} parent=5 // pred_region
        %s1210 = ssub.s32 %s10, 2
        // Predicated region
        $region49: #{aladyn_forward.5} parent=47 // pred_check
          %p1211 = pneg %p104
        $region50: #{aladyn_forward.5} parent=47 // pred_check_branch
          %1213 = sbr.rel (%p1211) target = $region52
        $region51: #{aladyn_forward.5} parent=47 // pred_region
          %s1214 = smul.u32 32, %s24
          %s1215 = smul.u32 2, %s25
          %p1216 = scmp.lt.s32.totalorder %s23, 3
          %s1217 = scalar_select %p1216, %s23, 3
          %p1218 = scmp.lt.s32.totalorder %s1214, 31
          %s1219 = scalar_select %p1218, %s1214, 31
          %p1220 = scmp.lt.s32.totalorder %s1215, 1
          %s1221 = scalar_select %p1220, %s1215, 1
          %s1222 = smul.addr %s1219, 2
          %s1223 = sadd.s32 %s1221, %s1222
          %s1224 = smul.addr %s1217, 64
          %s1225 = sadd.s32 %s1223, %s1224
          %s1226 = smul.addr %s1225, 8
          %s1227 = scalar_lea.vmem %s2, %s1226
        $region52: #{aladyn_forward.5} parent=47 // pred_fallthru
          _
      $region48: #{aladyn_forward.5} parent=5 // pred_fallthru
        _
    $region6: #{aladyn_forward.5} parent=1 // loop_footer
      %s14 = sadd.s32 1, %s10
    $region7: #{aladyn_forward.5} parent=1 // loop_footer_branch
      %9 = sbr.rel target = $region3
    $region8: #{aladyn_forward.5} parent=1 // loop_exit
      _
    %1228 = vsyncpa [#allocation3], 1
    %s1229 = scalar_lea.sflag [#allocation3], 1
    %1230 = vsyncpa %s1229, 1
    %1231 = vsyncpa [#allocation5], 1

</llo_original>
